<compile_context>
chip_gen: v5e
topology: v5e:2x2
jax: 0.10.0
libtpu: 0.0.40
codegen_flags: <defaults>
</compile_context>

<pallas_src>
import numpy as np
import jax
import jax.numpy as jnp
from jax.experimental import pallas as pl
from jax.experimental.pallas import tpu as pltpu


# 3x3 tap order: t = (dy+1)*3 + (dx+1)  <->  OIHW weight tap (ky, kx) = (dy+1, dx+1)
_TAPS = tuple((dy, dx) for dy in (-1, 0, 1) for dx in (-1, 0, 1))


# ----------------------------------------------------------------------------
# Host-side constant construction (shapes are static -> plain numpy)
# ----------------------------------------------------------------------------
def _bilinear_idx_w(out_size, in_size):
    # PyTorch F.interpolate(scale_factor=2, mode="bilinear", align_corners=False,
    # recompute_scale_factor=True): out = 2*in, src = max(0, (dst+0.5)*in/out - 0.5)
    dst = np.arange(out_size, dtype=np.float64)
    src = np.maximum((dst + 0.5) * (in_size / out_size) - 0.5, 0.0)
    i0 = np.floor(src).astype(np.int32)
    i1 = np.minimum(i0 + 1, in_size - 1).astype(np.int32)
    f = (src - i0).astype(np.float32)
    return i0, i1, f


def _axis_upsample_matrix(in_size):
    out_size = 2 * in_size
    i0, i1, f = _bilinear_idx_w(out_size, in_size)
    U = np.zeros((in_size, out_size), np.float32)
    for o in range(out_size):
        U[i0[o], o] += 1.0 - f[o]
        U[i1[o], o] += f[o]
    return U


def _upsample2x_matrix(h, w):
    """(h*w, 4*h*w) operator so that (C, h*w) @ U == flattened 2x bilinear upsample."""
    return np.kron(_axis_upsample_matrix(h), _axis_upsample_matrix(w)).astype(np.float32)


def _tap_masks(h, w):
    """(9, h*w) f32 validity masks: zero where the tap would read out of bounds."""
    y = np.arange(h)[:, None]
    x = np.arange(w)[None, :]
    masks = np.zeros((9, h * w), np.float32)
    for t, (dy, dx) in enumerate(_TAPS):
        valid = (y + dy >= 0) & (y + dy < h) & (x + dx >= 0) & (x + dx < w)
        masks[t] = valid.astype(np.float32).reshape(-1)
    return masks


# ----------------------------------------------------------------------------
# The fused Pallas kernel (whole FPN neck, one batch element per grid step)
# ----------------------------------------------------------------------------
def _make_fpn_kernel(L, cout, cins, ws, hws, pad_left, win_w):
    def kernel(*refs):
        p = 0
        xs = refs[p:p + L]; p += L                # (1, Cin_i, HW_i)  input features
        wl_ref = refs[p]; p += 1                  # (L, Cout, Cin_max) lateral 1x1 weights
        wf_ref = refs[p]; p += 1                  # (L, Cout, 9*Cout)  fused 3x3 weights
        b_ref = refs[p]; p += 1                   # (Cout, 2L)         [lateral | fpn] biases
        u_refs = refs[p:p + L - 1]; p += L - 1    # (HW_{i+1}, HW_i)   2x bilinear operators
        mk_ref = refs[p]; p += 1                  # (9L, HW_max)       tap validity masks
        outs = refs[p:p + L]; p += L              # (1, Cout, HW_i)    outputs
        win_ref = refs[p]                         # (Cout, win_w)      shift-window scratch
        stk_ref = refs[p + 1]                     # (9*Cout, HW_max)   stacked-tap scratch

        dotf = lambda a, b: jnp.dot(a, b, preferred_element_type=jnp.float32)

        # Zero the shift window once per step so masked positions can never
        # pick up uninitialized VMEM (0.0 * NaN would poison the result).
        win_ref[...] = jnp.zeros((cout, win_w), jnp.float32)

        # ---- lateral 1x1 convs (conv_extract): channel-major, lane-dense --------
        fuse = []
        for i in range(L):
            w = wl_ref[i][:, :cins[i]]                       # (Cout, Cin_i)
            fuse.append(dotf(w, xs[i][0]) + b_ref[:, i:i + 1])

        # ---- top-down pathway (upscale + conv_add): small matmul per level ------
        for i in range(L - 1, 0, -1):
            fuse[i - 1] = fuse[i - 1] + dotf(fuse[i], u_refs[i - 1][...])

        # ---- output 3x3 convs (fpn_conv): 9 window-slice shifts + ONE K=9*Cout matmul
        for i in range(L):
            hw, W = hws[i], ws[i]
            # Place the level's activation inside the padded window (lane-aligned store).
            win_ref[:, pad_left:pad_left + hw] = fuse[i]
            for t, (dy, dx) in enumerate(_TAPS):
                if dy == 0 and dx == 0:
                    tap = fuse[i]
                else:
                    d = dy * W + dx
                    piece = win_ref[:, pad_left + d:pad_left + d + hw]   # cheap shifted load
                    tap = piece * mk_ref[9 * i + t:9 * i + t + 1, :hw]   # zero invalid taps
                stk_ref[t * cout:(t + 1) * cout, :hw] = tap
            res = dotf(wf_ref[i], stk_ref[:, :hw]) + b_ref[:, L + i:L + i + 1]
            outs[i][0] = res.astype(outs[i].dtype)

    return kernel


# ----------------------------------------------------------------------------
# Wrapper
# ----------------------------------------------------------------------------
def mmfpn_forward(features_nchw, packed, in_strides, out_strides):
    src_idx = in_strides.index(out_strides[0])
    feats = features_nchw[src_idx:]
    L = len(out_strides)
    assert len(feats) == L
    N = int(feats[0].shape[0])
    dtype = feats[0].dtype

    cins = [int(f.shape[1]) for f in feats]
    hs = [int(f.shape[2]) for f in feats]
    ws = [int(f.shape[3]) for f in feats]
    hws = [hs[i] * ws[i] for i in range(L)]
    cout = int(packed["wl"].shape[1])
    for i in range(L - 1):
        assert hs[i] == 2 * hs[i + 1] and ws[i] == 2 * ws[i + 1], "strides must be 2x apart"

    # Channel-major flattened views of the NCHW inputs (free reshape, no transpose).
    xs = [feats[i].reshape(N, cins[i], hws[i]) for i in range(L)]

    # Small shape-only constants.
    ups = [jnp.asarray(_upsample2x_matrix(hs[i + 1], ws[i + 1])) for i in range(L - 1)]
    mk = np.zeros((9 * L, max(hws)), np.float32)
    for i in range(L):
        mk[9 * i:9 * (i + 1), :hws[i]] = _tap_masks(hs[i], ws[i])
    mk = jnp.asarray(mk)

    pad_left = 128                       # lane-aligned interior store in the window scratch
    win_w = pad_left + hws[0] + ws[0] + 1

    def const_spec(a):
        nd = a.ndim
        return pl.BlockSpec(a.shape, lambda n, _nd=nd: (0,) * _nd)

    in_specs = (
        [pl.BlockSpec((1, cins[i], hws[i]), lambda n: (n, 0, 0)) for i in range(L)]
        + [const_spec(packed["wl"]), const_spec(packed["wf"]), const_spec(packed["bb"])]
        + [const_spec(u) for u in ups]
        + [const_spec(mk)]
    )
    out_specs = tuple(pl.BlockSpec((1, cout, hws[i]), lambda n: (n, 0, 0)) for i in range(L))
    out_shape = tuple(jax.ShapeDtypeStruct((N, cout, hws[i]), dtype) for i in range(L))

    kernel = _make_fpn_kernel(L, cout, cins, ws, hws, pad_left, win_w)

    outs = pl.pallas_call(
        kernel,
        out_shape=out_shape,
        grid=(N,),
        in_specs=in_specs,
        out_specs=out_specs,
        scratch_shapes=[
            pltpu.VMEM((cout, win_w), jnp.float32),
            pltpu.VMEM((9 * cout, hws[0]), jnp.float32),
        ],
        compiler_params=pltpu.CompilerParams(
            dimension_semantics=("parallel",),
            vmem_limit_bytes=32 * 1024 * 1024),
    )(*xs, packed["wl"], packed["wf"], packed["bb"], *ups, mk)

    # Channel-major result is already NCHW: only a free reshape is needed.
    return [outs[i].reshape(N, cout, hs[i], ws[i]) for i in range(L)]


# ----------------------------------------------------------------------------
# Pure-JAX reference (correctness check of the Pallas path)
# ----------------------------------------------------------------------------
def _ref_conv(x_nchw, w_oihw, b, pad):
    y = jax.lax.conv_general_dilated(
        x_nchw, w_oihw, (1, 1), ((pad, pad), (pad, pad)),
        dimension_numbers=("NCHW", "OIHW", "NCHW"),
        precision=jax.lax.Precision.HIGHEST)
    return y + b[None, :, None, None]


def _ref_upsample2x(x_nchw):
    _, _, h, w = x_nchw.shape
    ih0, ih1, fh = _bilinear_idx_w(2 * h, h)
    iw0, iw1, fw = _bilinear_idx_w(2 * w, w)
    gh0 = jnp.take(x_nchw, jnp.asarray(ih0), axis=2)
    gh1 = jnp.take(x_nchw, jnp.asarray(ih1), axis=2)
    g00 = jnp.take(gh0, jnp.asarray(iw0), axis=3)
    g01 = jnp.take(gh0, jnp.asarray(iw1), axis=3)
    g10 = jnp.take(gh1, jnp.asarray(iw0), axis=3)
    g11 = jnp.take(gh1, jnp.asarray(iw1), axis=3)
    FH = jnp.asarray(fh, x_nchw.dtype)[None, None, :, None]
    FW = jnp.asarray(fw, x_nchw.dtype)[None, None, None, :]
    return ((1 - FH) * (1 - FW) * g00 + (1 - FH) * FW * g01
            + FH * (1 - FW) * g10 + FH * FW * g11)


def mmfpn_forward_ref(features_nchw, tparams, in_strides, out_strides):
    src_idx = in_strides.index(out_strides[0])
    feats = features_nchw[src_idx:]
    L = len(out_strides)
    fuse = [_ref_conv(feats[i], tparams["lat_w"][i], tparams["lat_b"][i], 0) for i in range(L)]
    for i in range(L - 1, 0, -1):
        fuse[i - 1] = fuse[i - 1] + _ref_upsample2x(fuse[i])
    return [_ref_conv(fuse[i], tparams["fpn_w"][i], tparams["fpn_b"][i], 1) for i in range(L)]


# ----------------------------------------------------------------------------
# Parameter init (deterministic, synthetic; mirrors module shapes) + packing
# ----------------------------------------------------------------------------
def init_params(key, used_in_channels, cfix):
    tparams = {"lat_w": [], "lat_b": [], "fpn_w": [], "fpn_b": []}   # torch OIHW form
    for cin in used_in_channels:
        key, k1, k2, k3, k4 = jax.random.split(key, 5)
        tparams["lat_w"].append(jax.random.normal(k1, (cfix, cin, 1, 1), jnp.float32) * 0.01)
        tparams["lat_b"].append(jax.random.normal(k2, (cfix,), jnp.float32) * 0.01)
        tparams["fpn_w"].append(jax.random.normal(k3, (cfix, cfix, 3, 3), jnp.float32) * 0.01)
        tparams["fpn_b"].append(jax.random.normal(k4, (cfix,), jnp.float32) * 0.01)
    return tparams


def pack_params(tparams, cfix):
    """Pack per-level weights/biases into few arrays (kernel-side layout)."""
    L = len(tparams["lat_w"])
    cins = [int(w.shape[1]) for w in tparams["lat_w"]]
    cin_max = max(cins)
    wl = np.zeros((L, cfix, cin_max), np.float32)
    wf = np.zeros((L, cfix, 9 * cfix), np.float32)
    bb = np.zeros((cfix, 2 * L), np.float32)
    for i in range(L):
        wl[i, :, :cins[i]] = np.asarray(tparams["lat_w"][i])[:, :, 0, 0]
        # W9[o, (ky*3+kx)*Cin + c] = w_oihw[o, c, ky, kx]
        wf[i] = np.asarray(tparams["fpn_w"][i]).transpose(0, 2, 3, 1).reshape(cfix, 9 * cfix)
        bb[:, i] = np.asarray(tparams["lat_b"][i])
        bb[:, L + i] = np.asarray(tparams["fpn_b"][i])
    return {"wl": jnp.asarray(wl), "wf": jnp.asarray(wf), "bb": jnp.asarray(bb)}


# ----------------------------------------------------------------------------
if __name__ == "__main__":
    in_strides = [4, 8, 16, 32]
    in_channels = [4, 8, 16, 32]
    out_strides = [8, 16, 32]
    fix_out_channel = 16
    base = 128   # "image" size -> spatial = base // stride
    N = 2

    key = jax.random.PRNGKey(0)
    feats = []
    for s, c in zip(in_strides, in_channels):
        key, k = jax.random.split(key)
        hw = base // s
        feats.append(jax.random.normal(k, (N, c, hw, hw), jnp.float32))

    src_idx = in_strides.index(out_strides[0])
    tparams = init_params(jax.random.PRNGKey(1), in_channels[src_idx:], fix_out_channel)
    packed = pack_params(tparams, fix_out_channel)

    outs = mmfpn_forward(feats, packed, in_strides, out_strides)
    outs = [jax.block_until_ready(o) for o in outs]

    refs = mmfpn_forward_ref(feats, tparams, in_strides, out_strides)
    refs = [jax.block_until_ready(r) for r in refs]

    for o, r in zip(outs, refs):
        assert o.shape == r.shape, (o.shape, r.shape)
        np.testing.assert_allclose(np.asarray(o), np.asarray(r), rtol=2e-3, atol=1e-5)

    print("KERNEL_OK")
</pallas_src>

<mosaic_0001>
module attributes {stable_mosaic.version = 11 : i64} {
  func.func @kernel(%arg0: i32, %arg1: memref<1x8x256xf32, #tpu.memory_space<vmem>>, %arg2: memref<1x16x64xf32, #tpu.memory_space<vmem>>, %arg3: memref<1x32x16xf32, #tpu.memory_space<vmem>>, %arg4: memref<3x16x32xf32, #tpu.memory_space<vmem>>, %arg5: memref<3x16x144xf32, #tpu.memory_space<vmem>>, %arg6: memref<16x6xf32, #tpu.memory_space<vmem>>, %arg7: memref<64x256xf32, #tpu.memory_space<vmem>>, %arg8: memref<16x64xf32, #tpu.memory_space<vmem>>, %arg9: memref<27x256xf32, #tpu.memory_space<vmem>>, %arg10: memref<1x16x256xf32, #tpu.memory_space<vmem>>, %arg11: memref<1x16x64xf32, #tpu.memory_space<vmem>>, %arg12: memref<1x16x16xf32, #tpu.memory_space<vmem>>, %arg13: memref<16x401xf32, #tpu.memory_space<vmem>>, %arg14: memref<144x256xf32, #tpu.memory_space<vmem>>) attributes {dimension_semantics = [#tpu.dimension_semantics<parallel>], iteration_bounds = array<i64: 2>, scalar_prefetch = 0 : i64, scratch_operands = 2 : i64, tpu.core_type = #tpu.core_type<tc>, window_params = [{transform_indices = @transform_0, window_bounds = array<i64: 1, 8, 256>}, {transform_indices = @transform_1, window_bounds = array<i64: 1, 16, 64>}, {transform_indices = @transform_2, window_bounds = array<i64: 1, 32, 16>}, {pipeline_mode = #tpu.pipeline_mode<synchronous>, transform_indices = @transform_3, window_bounds = array<i64: 3, 16, 32>}, {pipeline_mode = #tpu.pipeline_mode<synchronous>, transform_indices = @transform_4, window_bounds = array<i64: 3, 16, 144>}, {pipeline_mode = #tpu.pipeline_mode<synchronous>, transform_indices = @transform_5, window_bounds = array<i64: 16, 6>}, {pipeline_mode = #tpu.pipeline_mode<synchronous>, transform_indices = @transform_6, window_bounds = array<i64: 64, 256>}, {pipeline_mode = #tpu.pipeline_mode<synchronous>, transform_indices = @transform_7, window_bounds = array<i64: 16, 64>}, {pipeline_mode = #tpu.pipeline_mode<synchronous>, transform_indices = @transform_8, window_bounds = array<i64: 27, 256>}, {transform_indices = @transform_9, window_bounds = array<i64: 1, 16, 256>}, {transform_indices = @transform_10, window_bounds = array<i64: 1, 16, 64>}, {transform_indices = @transform_11, window_bounds = array<i64: 1, 16, 16>}]} {
    %cst = arith.constant 0.000000e+00 : f32
    %0 = vector.broadcast %cst : f32 to vector<16x401xf32>
    %c0 = arith.constant 0 : index
    %c0_0 = arith.constant 0 : index
    %1 = vector.load %arg13[%c0, %c0_0] : memref<16x401xf32, #tpu.memory_space<vmem>>, vector<16x401xf32>
    tpu.vector_store %arg13[%c0, %c0_0], %0 {strides = array<i32>} : memref<16x401xf32, #tpu.memory_space<vmem>>, vector<16x401xf32>,
    %c0_1 = arith.constant 0 : index
    %c0_2 = arith.constant 0 : index
    %c0_3 = arith.constant 0 : index
    %2 = vector.load %arg4[%c0_1, %c0_2, %c0_3] : memref<3x16x32xf32, #tpu.memory_space<vmem>>, vector<1x16x32xf32>
    %3 = vector.shape_cast %2 : vector<1x16x32xf32> to vector<16x32xf32>
    %4 = vector.extract_strided_slice %3 {offsets = [0, 0], sizes = [16, 8], strides = [1, 1]} : vector<16x32xf32> to vector<16x8xf32>
    %c0_4 = arith.constant 0 : index
    %c0_5 = arith.constant 0 : index
    %c0_6 = arith.constant 0 : index
    %5 = vector.load %arg1[%c0_4, %c0_5, %c0_6] : memref<1x8x256xf32, #tpu.memory_space<vmem>>, vector<1x8x256xf32>
    %6 = vector.shape_cast %5 : vector<1x8x256xf32> to vector<8x256xf32>
    %cst_7 = arith.constant dense<0.000000e+00> : vector<16x256xf32>
    %7 = tpu.matmul %4, %6, %cst_7 {dimension_numbers = #tpu.dot_dimension_numbers<[1], [0], [0], [1], [0, 0, 1, 1], [], []>} : vector<16x8xf32>, vector<8x256xf32>, vector<16x256xf32> -> vector<16x256xf32>
    %c0_8 = arith.constant 0 : index
    %c0_9 = arith.constant 0 : index
    %8 = vector.load %arg6[%c0_8, %c0_9] : memref<16x6xf32, #tpu.memory_space<vmem>>, vector<16x1xf32>
    %9 = vector.broadcast %8 : vector<16x1xf32> to vector<16x256xf32>
    %10 = arith.addf %7, %9 : vector<16x256xf32>
    %c1 = arith.constant 1 : index
    %c0_10 = arith.constant 0 : index
    %c0_11 = arith.constant 0 : index
    %11 = vector.load %arg4[%c1, %c0_10, %c0_11] : memref<3x16x32xf32, #tpu.memory_space<vmem>>, vector<1x16x32xf32>
    %12 = vector.shape_cast %11 : vector<1x16x32xf32> to vector<16x32xf32>
    %13 = vector.extract_strided_slice %12 {offsets = [0, 0], sizes = [16, 16], strides = [1, 1]} : vector<16x32xf32> to vector<16x16xf32>
    %c0_12 = arith.constant 0 : index
    %c0_13 = arith.constant 0 : index
    %c0_14 = arith.constant 0 : index
    %14 = vector.load %arg2[%c0_12, %c0_13, %c0_14] : memref<1x16x64xf32, #tpu.memory_space<vmem>>, vector<1x16x64xf32>
    %15 = vector.shape_cast %14 : vector<1x16x64xf32> to vector<16x64xf32>
    %cst_15 = arith.constant dense<0.000000e+00> : vector<16x64xf32>
    %16 = tpu.matmul %13, %15, %cst_15 {dimension_numbers = #tpu.dot_dimension_numbers<[1], [0], [0], [1], [0, 0, 1, 1], [], []>} : vector<16x16xf32>, vector<16x64xf32>, vector<16x64xf32> -> vector<16x64xf32>
    %c0_16 = arith.constant 0 : index
    %c1_17 = arith.constant 1 : index
    %17 = vector.load %arg6[%c0_16, %c1_17] : memref<16x6xf32, #tpu.memory_space<vmem>>, vector<16x1xf32>
    %18 = vector.broadcast %17 : vector<16x1xf32> to vector<16x64xf32>
    %19 = arith.addf %16, %18 : vector<16x64xf32>
    %c2 = arith.constant 2 : index
    %c0_18 = arith.constant 0 : index
    %c0_19 = arith.constant 0 : index
    %20 = vector.load %arg4[%c2, %c0_18, %c0_19] : memref<3x16x32xf32, #tpu.memory_space<vmem>>, vector<1x16x32xf32>
    %21 = vector.shape_cast %20 : vector<1x16x32xf32> to vector<16x32xf32>
    %c0_20 = arith.constant 0 : index
    %c0_21 = arith.constant 0 : index
    %c0_22 = arith.constant 0 : index
    %22 = vector.load %arg3[%c0_20, %c0_21, %c0_22] : memref<1x32x16xf32, #tpu.memory_space<vmem>>, vector<1x32x16xf32>
    %23 = vector.shape_cast %22 : vector<1x32x16xf32> to vector<32x16xf32>
    %cst_23 = arith.constant dense<0.000000e+00> : vector<16x16xf32>
    %24 = tpu.matmul %21, %23, %cst_23 {dimension_numbers = #tpu.dot_dimension_numbers<[1], [0], [0], [1], [0, 0, 1, 1], [], []>} : vector<16x32xf32>, vector<32x16xf32>, vector<16x16xf32> -> vector<16x16xf32>
    %c0_24 = arith.constant 0 : index
    %c2_25 = arith.constant 2 : index
    %25 = vector.load %arg6[%c0_24, %c2_25] : memref<16x6xf32, #tpu.memory_space<vmem>>, vector<16x1xf32>
    %26 = vector.broadcast %25 : vector<16x1xf32> to vector<16x16xf32>
    %27 = arith.addf %24, %26 : vector<16x16xf32>
    %c0_26 = arith.constant 0 : index
    %c0_27 = arith.constant 0 : index
    %28 = vector.load %arg8[%c0_26, %c0_27] : memref<16x64xf32, #tpu.memory_space<vmem>>, vector<16x64xf32>
    %cst_28 = arith.constant dense<0.000000e+00> : vector<16x64xf32>
    %29 = tpu.matmul %27, %28, %cst_28 {dimension_numbers = #tpu.dot_dimension_numbers<[1], [0], [0], [1], [0, 0, 1, 1], [], []>} : vector<16x16xf32>, vector<16x64xf32>, vector<16x64xf32> -> vector<16x64xf32>
    %30 = arith.addf %19, %29 : vector<16x64xf32>
    %c0_29 = arith.constant 0 : index
    %c0_30 = arith.constant 0 : index
    %31 = vector.load %arg7[%c0_29, %c0_30] : memref<64x256xf32, #tpu.memory_space<vmem>>, vector<64x256xf32>
    %cst_31 = arith.constant dense<0.000000e+00> : vector<16x256xf32>
    %32 = tpu.matmul %30, %31, %cst_31 {dimension_numbers = #tpu.dot_dimension_numbers<[1], [0], [0], [1], [0, 0, 1, 1], [], []>} : vector<16x64xf32>, vector<64x256xf32>, vector<16x256xf32> -> vector<16x256xf32>
    %33 = arith.addf %10, %32 : vector<16x256xf32>
    %c0_32 = arith.constant 0 : index
    %c128 = arith.constant 128 : index
    %34 = vector.load %arg13[%c0_32, %c128] : memref<16x401xf32, #tpu.memory_space<vmem>>, vector<16x256xf32>
    tpu.vector_store %arg13[%c0_32, %c128], %33 {strides = array<i32>} : memref<16x401xf32, #tpu.memory_space<vmem>>, vector<16x256xf32>,
    %c0_33 = arith.constant 0 : index
    %c111 = arith.constant 111 : index
    %35 = vector.load %arg13[%c0_33, %c111] : memref<16x401xf32, #tpu.memory_space<vmem>>, vector<16x256xf32>
    %c0_34 = arith.constant 0 : index
    %c0_35 = arith.constant 0 : index
    %36 = vector.load %arg9[%c0_34, %c0_35] : memref<27x256xf32, #tpu.memory_space<vmem>>, vector<1x256xf32>
    %37 = vector.broadcast %36 : vector<1x256xf32> to vector<16x256xf32>
    %38 = arith.mulf %35, %37 : vector<16x256xf32>
    %c0_36 = arith.constant 0 : index
    %c0_37 = arith.constant 0 : index
    %39 = vector.load %arg14[%c0_36, %c0_37] : memref<144x256xf32, #tpu.memory_space<vmem>>, vector<16x256xf32>
    tpu.vector_store %arg14[%c0_36, %c0_37], %38 {strides = array<i32>} : memref<144x256xf32, #tpu.memory_space<vmem>>, vector<16x256xf32>,
    %c0_38 = arith.constant 0 : index
    %c112 = arith.constant 112 : index
    %40 = vector.load %arg13[%c0_38, %c112] : memref<16x401xf32, #tpu.memory_space<vmem>>, vector<16x256xf32>
    %c1_39 = arith.constant 1 : index
    %c0_40 = arith.constant 0 : index
    %41 = vector.load %arg9[%c1_39, %c0_40] : memref<27x256xf32, #tpu.memory_space<vmem>>, vector<1x256xf32>
    %42 = vector.broadcast %41 : vector<1x256xf32> to vector<16x256xf32>
    %43 = arith.mulf %40, %42 : vector<16x256xf32>
    %c16 = arith.constant 16 : index
    %c0_41 = arith.constant 0 : index
    %44 = vector.load %arg14[%c16, %c0_41] : memref<144x256xf32, #tpu.memory_space<vmem>>, vector<16x256xf32>
    tpu.vector_store %arg14[%c16, %c0_41], %43 {strides = array<i32>} : memref<144x256xf32, #tpu.memory_space<vmem>>, vector<16x256xf32>,
    %c0_42 = arith.constant 0 : index
    %c113 = arith.constant 113 : index
    %45 = vector.load %arg13[%c0_42, %c113] : memref<16x401xf32, #tpu.memory_space<vmem>>, vector<16x256xf32>
    %c2_43 = arith.constant 2 : index
    %c0_44 = arith.constant 0 : index
    %46 = vector.load %arg9[%c2_43, %c0_44] : memref<27x256xf32, #tpu.memory_space<vmem>>, vector<1x256xf32>
    %47 = vector.broadcast %46 : vector<1x256xf32> to vector<16x256xf32>
    %48 = arith.mulf %45, %47 : vector<16x256xf32>
    %c32 = arith.constant 32 : index
    %c0_45 = arith.constant 0 : index
    %49 = vector.load %arg14[%c32, %c0_45] : memref<144x256xf32, #tpu.memory_space<vmem>>, vector<16x256xf32>
    tpu.vector_store %arg14[%c32, %c0_45], %48 {strides = array<i32>} : memref<144x256xf32, #tpu.memory_space<vmem>>, vector<16x256xf32>,
    %c0_46 = arith.constant 0 : index
    %c127 = arith.constant 127 : index
    %50 = vector.load %arg13[%c0_46, %c127] : memref<16x401xf32, #tpu.memory_space<vmem>>, vector<16x256xf32>
    %c3 = arith.constant 3 : index
    %c0_47 = arith.constant 0 : index
    %51 = vector.load %arg9[%c3, %c0_47] : memref<27x256xf32, #tpu.memory_space<vmem>>, vector<1x256xf32>
    %52 = vector.broadcast %51 : vector<1x256xf32> to vector<16x256xf32>
    %53 = arith.mulf %50, %52 : vector<16x256xf32>
    %c48 = arith.constant 48 : index
    %c0_48 = arith.constant 0 : index
    %54 = vector.load %arg14[%c48, %c0_48] : memref<144x256xf32, #tpu.memory_space<vmem>>, vector<16x256xf32>
    tpu.vector_store %arg14[%c48, %c0_48], %53 {strides = array<i32>} : memref<144x256xf32, #tpu.memory_space<vmem>>, vector<16x256xf32>,
    %c64 = arith.constant 64 : index
    %c0_49 = arith.constant 0 : index
    %55 = vector.load %arg14[%c64, %c0_49] : memref<144x256xf32, #tpu.memory_space<vmem>>, vector<16x256xf32>
    tpu.vector_store %arg14[%c64, %c0_49], %33 {strides = array<i32>} : memref<144x256xf32, #tpu.memory_space<vmem>>, vector<16x256xf32>,
    %c0_50 = arith.constant 0 : index
    %c129 = arith.constant 129 : index
    %56 = vector.load %arg13[%c0_50, %c129] : memref<16x401xf32, #tpu.memory_space<vmem>>, vector<16x256xf32>
    %c5 = arith.constant 5 : index
    %c0_51 = arith.constant 0 : index
    %57 = vector.load %arg9[%c5, %c0_51] : memref<27x256xf32, #tpu.memory_space<vmem>>, vector<1x256xf32>
    %58 = vector.broadcast %57 : vector<1x256xf32> to vector<16x256xf32>
    %59 = arith.mulf %56, %58 : vector<16x256xf32>
    %c80 = arith.constant 80 : index
    %c0_52 = arith.constant 0 : index
    %60 = vector.load %arg14[%c80, %c0_52] : memref<144x256xf32, #tpu.memory_space<vmem>>, vector<16x256xf32>
    tpu.vector_store %arg14[%c80, %c0_52], %59 {strides = array<i32>} : memref<144x256xf32, #tpu.memory_space<vmem>>, vector<16x256xf32>,
    %c0_53 = arith.constant 0 : index
    %c143 = arith.constant 143 : index
    %61 = vector.load %arg13[%c0_53, %c143] : memref<16x401xf32, #tpu.memory_space<vmem>>, vector<16x256xf32>
    %c6 = arith.constant 6 : index
    %c0_54 = arith.constant 0 : index
    %62 = vector.load %arg9[%c6, %c0_54] : memref<27x256xf32, #tpu.memory_space<vmem>>, vector<1x256xf32>
    %63 = vector.broadcast %62 : vector<1x256xf32> to vector<16x256xf32>
    %64 = arith.mulf %61, %63 : vector<16x256xf32>
    %c96 = arith.constant 96 : index
    %c0_55 = arith.constant 0 : index
    %65 = vector.load %arg14[%c96, %c0_55] : memref<144x256xf32, #tpu.memory_space<vmem>>, vector<16x256xf32>
    tpu.vector_store %arg14[%c96, %c0_55], %64 {strides = array<i32>} : memref<144x256xf32, #tpu.memory_space<vmem>>, vector<16x256xf32>,
    %c0_56 = arith.constant 0 : index
    %c144 = arith.constant 144 : index
    %66 = vector.load %arg13[%c0_56, %c144] : memref<16x401xf32, #tpu.memory_space<vmem>>, vector<16x256xf32>
    %c7 = arith.constant 7 : index
    %c0_57 = arith.constant 0 : index
    %67 = vector.load %arg9[%c7, %c0_57] : memref<27x256xf32, #tpu.memory_space<vmem>>, vector<1x256xf32>
    %68 = vector.broadcast %67 : vector<1x256xf32> to vector<16x256xf32>
    %69 = arith.mulf %66, %68 : vector<16x256xf32>
    %c112_58 = arith.constant 112 : index
    %c0_59 = arith.constant 0 : index
    %70 = vector.load %arg14[%c112_58, %c0_59] : memref<144x256xf32, #tpu.memory_space<vmem>>, vector<16x256xf32>
    tpu.vector_store %arg14[%c112_58, %c0_59], %69 {strides = array<i32>} : memref<144x256xf32, #tpu.memory_space<vmem>>, vector<16x256xf32>,
    %c0_60 = arith.constant 0 : index
    %c145 = arith.constant 145 : index
    %71 = vector.load %arg13[%c0_60, %c145] : memref<16x401xf32, #tpu.memory_space<vmem>>, vector<16x256xf32>
    %c8 = arith.constant 8 : index
    %c0_61 = arith.constant 0 : index
    %72 = vector.load %arg9[%c8, %c0_61] : memref<27x256xf32, #tpu.memory_space<vmem>>, vector<1x256xf32>
    %73 = vector.broadcast %72 : vector<1x256xf32> to vector<16x256xf32>
    %74 = arith.mulf %71, %73 : vector<16x256xf32>
    %c128_62 = arith.constant 128 : index
    %c0_63 = arith.constant 0 : index
    %75 = vector.load %arg14[%c128_62, %c0_63] : memref<144x256xf32, #tpu.memory_space<vmem>>, vector<16x256xf32>
    tpu.vector_store %arg14[%c128_62, %c0_63], %74 {strides = array<i32>} : memref<144x256xf32, #tpu.memory_space<vmem>>, vector<16x256xf32>,
    %c0_64 = arith.constant 0 : index
    %c0_65 = arith.constant 0 : index
    %c0_66 = arith.constant 0 : index
    %76 = vector.load %arg5[%c0_64, %c0_65, %c0_66] : memref<3x16x144xf32, #tpu.memory_space<vmem>>, vector<1x16x144xf32>
    %77 = vector.shape_cast %76 : vector<1x16x144xf32> to vector<16x144xf32>
    %c0_67 = arith.constant 0 : index
    %c0_68 = arith.constant 0 : index
    %78 = vector.load %arg14[%c0_67, %c0_68] : memref<144x256xf32, #tpu.memory_space<vmem>>, vector<144x256xf32>
    %cst_69 = arith.constant dense<0.000000e+00> : vector<16x256xf32>
    %79 = tpu.matmul %77, %78, %cst_69 {dimension_numbers = #tpu.dot_dimension_numbers<[1], [0], [0], [1], [0, 0, 1, 1], [], []>} : vector<16x144xf32>, vector<144x256xf32>, vector<16x256xf32> -> vector<16x256xf32>
    %c0_70 = arith.constant 0 : index
    %c3_71 = arith.constant 3 : index
    %80 = vector.load %arg6[%c0_70, %c3_71] : memref<16x6xf32, #tpu.memory_space<vmem>>, vector<16x1xf32>
    %81 = vector.broadcast %80 : vector<16x1xf32> to vector<16x256xf32>
    %82 = arith.addf %79, %81 : vector<16x256xf32>
    %c0_72 = arith.constant 0 : index
    %c0_73 = arith.constant 0 : index
    %c0_74 = arith.constant 0 : index
    %83 = vector.load %arg10[%c0_72, %c0_73, %c0_74] : memref<1x16x256xf32, #tpu.memory_space<vmem>>, vector<1x16x256xf32>
    %84 = vector.shape_cast %83 : vector<1x16x256xf32> to vector<16x256xf32>
    %85 = vector.shape_cast %82 : vector<16x256xf32> to vector<1x16x256xf32>
    tpu.vector_store %arg10[%c0_72, %c0_73, %c0_74], %85 {strides = array<i32>} : memref<1x16x256xf32, #tpu.memory_space<vmem>>, vector<1x16x256xf32>,
    %c0_75 = arith.constant 0 : index
    %c128_76 = arith.constant 128 : index
    %86 = vector.load %arg13[%c0_75, %c128_76] : memref<16x401xf32, #tpu.memory_space<vmem>>, vector<16x64xf32>
    tpu.vector_store %arg13[%c0_75, %c128_76], %30 {strides = array<i32>} : memref<16x401xf32, #tpu.memory_space<vmem>>, vector<16x64xf32>,
    %c0_77 = arith.constant 0 : index
    %c119 = arith.constant 119 : index
    %87 = vector.load %arg13[%c0_77, %c119] : memref<16x401xf32, #tpu.memory_space<vmem>>, vector<16x64xf32>
    %c9 = arith.constant 9 : index
    %c0_78 = arith.constant 0 : index
    %88 = vector.load %arg9[%c9, %c0_78] : memref<27x256xf32, #tpu.memory_space<vmem>>, vector<1x64xf32>
    %89 = vector.broadcast %88 : vector<1x64xf32> to vector<16x64xf32>
    %90 = arith.mulf %87, %89 : vector<16x64xf32>
    %c0_79 = arith.constant 0 : index
    %c0_80 = arith.constant 0 : index
    %91 = vector.load %arg14[%c0_79, %c0_80] : memref<144x256xf32, #tpu.memory_space<vmem>>, vector<16x64xf32>
    tpu.vector_store %arg14[%c0_79, %c0_80], %90 {strides = array<i32>} : memref<144x256xf32, #tpu.memory_space<vmem>>, vector<16x64xf32>,
    %c0_81 = arith.constant 0 : index
    %c120 = arith.constant 120 : index
    %92 = vector.load %arg13[%c0_81, %c120] : memref<16x401xf32, #tpu.memory_space<vmem>>, vector<16x64xf32>
    %c10 = arith.constant 10 : index
    %c0_82 = arith.constant 0 : index
    %93 = vector.load %arg9[%c10, %c0_82] : memref<27x256xf32, #tpu.memory_space<vmem>>, vector<1x64xf32>
    %94 = vector.broadcast %93 : vector<1x64xf32> to vector<16x64xf32>
    %95 = arith.mulf %92, %94 : vector<16x64xf32>
    %c16_83 = arith.constant 16 : index
    %c0_84 = arith.constant 0 : index
    %96 = vector.load %arg14[%c16_83, %c0_84] : memref<144x256xf32, #tpu.memory_space<vmem>>, vector<16x64xf32>
    tpu.vector_store %arg14[%c16_83, %c0_84], %95 {strides = array<i32>} : memref<144x256xf32, #tpu.memory_space<vmem>>, vector<16x64xf32>,
    %c0_85 = arith.constant 0 : index
    %c121 = arith.constant 121 : index
    %97 = vector.load %arg13[%c0_85, %c121] : memref<16x401xf32, #tpu.memory_space<vmem>>, vector<16x64xf32>
    %c11 = arith.constant 11 : index
    %c0_86 = arith.constant 0 : index
    %98 = vector.load %arg9[%c11, %c0_86] : memref<27x256xf32, #tpu.memory_space<vmem>>, vector<1x64xf32>
    %99 = vector.broadcast %98 : vector<1x64xf32> to vector<16x64xf32>
    %100 = arith.mulf %97, %99 : vector<16x64xf32>
    %c32_87 = arith.constant 32 : index
    %c0_88 = arith.constant 0 : index
    %101 = vector.load %arg14[%c32_87, %c0_88] : memref<144x256xf32, #tpu.memory_space<vmem>>, vector<16x64xf32>
    tpu.vector_store %arg14[%c32_87, %c0_88], %100 {strides = array<i32>} : memref<144x256xf32, #tpu.memory_space<vmem>>, vector<16x64xf32>,
    %c0_89 = arith.constant 0 : index
    %c127_90 = arith.constant 127 : index
    %102 = vector.load %arg13[%c0_89, %c127_90] : memref<16x401xf32, #tpu.memory_space<vmem>>, vector<16x64xf32>
    %c12 = arith.constant 12 : index
    %c0_91 = arith.constant 0 : index
    %103 = vector.load %arg9[%c12, %c0_91] : memref<27x256xf32, #tpu.memory_space<vmem>>, vector<1x64xf32>
    %104 = vector.broadcast %103 : vector<1x64xf32> to vector<16x64xf32>
    %105 = arith.mulf %102, %104 : vector<16x64xf32>
    %c48_92 = arith.constant 48 : index
    %c0_93 = arith.constant 0 : index
    %106 = vector.load %arg14[%c48_92, %c0_93] : memref<144x256xf32, #tpu.memory_space<vmem>>, vector<16x64xf32>
    tpu.vector_store %arg14[%c48_92, %c0_93], %105 {strides = array<i32>} : memref<144x256xf32, #tpu.memory_space<vmem>>, vector<16x64xf32>,
    %c64_94 = arith.constant 64 : index
    %c0_95 = arith.constant 0 : index
    %107 = vector.load %arg14[%c64_94, %c0_95] : memref<144x256xf32, #tpu.memory_space<vmem>>, vector<16x64xf32>
    tpu.vector_store %arg14[%c64_94, %c0_95], %30 {strides = array<i32>} : memref<144x256xf32, #tpu.memory_space<vmem>>, vector<16x64xf32>,
    %c0_96 = arith.constant 0 : index
    %c129_97 = arith.constant 129 : index
    %108 = vector.load %arg13[%c0_96, %c129_97] : memref<16x401xf32, #tpu.memory_space<vmem>>, vector<16x64xf32>
    %c14 = arith.constant 14 : index
    %c0_98 = arith.constant 0 : index
    %109 = vector.load %arg9[%c14, %c0_98] : memref<27x256xf32, #tpu.memory_space<vmem>>, vector<1x64xf32>
    %110 = vector.broadcast %109 : vector<1x64xf32> to vector<16x64xf32>
    %111 = arith.mulf %108, %110 : vector<16x64xf32>
    %c80_99 = arith.constant 80 : index
    %c0_100 = arith.constant 0 : index
    %112 = vector.load %arg14[%c80_99, %c0_100] : memref<144x256xf32, #tpu.memory_space<vmem>>, vector<16x64xf32>
    tpu.vector_store %arg14[%c80_99, %c0_100], %111 {strides = array<i32>} : memref<144x256xf32, #tpu.memory_space<vmem>>, vector<16x64xf32>,
    %c0_101 = arith.constant 0 : index
    %c135 = arith.constant 135 : index
    %113 = vector.load %arg13[%c0_101, %c135] : memref<16x401xf32, #tpu.memory_space<vmem>>, vector<16x64xf32>
    %c15 = arith.constant 15 : index
    %c0_102 = arith.constant 0 : index
    %114 = vector.load %arg9[%c15, %c0_102] : memref<27x256xf32, #tpu.memory_space<vmem>>, vector<1x64xf32>
    %115 = vector.broadcast %114 : vector<1x64xf32> to vector<16x64xf32>
    %116 = arith.mulf %113, %115 : vector<16x64xf32>
    %c96_103 = arith.constant 96 : index
    %c0_104 = arith.constant 0 : index
    %117 = vector.load %arg14[%c96_103, %c0_104] : memref<144x256xf32, #tpu.memory_space<vmem>>, vector<16x64xf32>
    tpu.vector_store %arg14[%c96_103, %c0_104], %116 {strides = array<i32>} : memref<144x256xf32, #tpu.memory_space<vmem>>, vector<16x64xf32>,
    %c0_105 = arith.constant 0 : index
    %c136 = arith.constant 136 : index
    %118 = vector.load %arg13[%c0_105, %c136] : memref<16x401xf32, #tpu.memory_space<vmem>>, vector<16x64xf32>
    %c16_106 = arith.constant 16 : index
    %c0_107 = arith.constant 0 : index
    %119 = vector.load %arg9[%c16_106, %c0_107] : memref<27x256xf32, #tpu.memory_space<vmem>>, vector<1x64xf32>
    %120 = vector.broadcast %119 : vector<1x64xf32> to vector<16x64xf32>
    %121 = arith.mulf %118, %120 : vector<16x64xf32>
    %c112_108 = arith.constant 112 : index
    %c0_109 = arith.constant 0 : index
    %122 = vector.load %arg14[%c112_108, %c0_109] : memref<144x256xf32, #tpu.memory_space<vmem>>, vector<16x64xf32>
    tpu.vector_store %arg14[%c112_108, %c0_109], %121 {strides = array<i32>} : memref<144x256xf32, #tpu.memory_space<vmem>>, vector<16x64xf32>,
    %c0_110 = arith.constant 0 : index
    %c137 = arith.constant 137 : index
    %123 = vector.load %arg13[%c0_110, %c137] : memref<16x401xf32, #tpu.memory_space<vmem>>, vector<16x64xf32>
    %c17 = arith.constant 17 : index
    %c0_111 = arith.constant 0 : index
    %124 = vector.load %arg9[%c17, %c0_111] : memref<27x256xf32, #tpu.memory_space<vmem>>, vector<1x64xf32>
    %125 = vector.broadcast %124 : vector<1x64xf32> to vector<16x64xf32>
    %126 = arith.mulf %123, %125 : vector<16x64xf32>
    %c128_112 = arith.constant 128 : index
    %c0_113 = arith.constant 0 : index
    %127 = vector.load %arg14[%c128_112, %c0_113] : memref<144x256xf32, #tpu.memory_space<vmem>>, vector<16x64xf32>
    tpu.vector_store %arg14[%c128_112, %c0_113], %126 {strides = array<i32>} : memref<144x256xf32, #tpu.memory_space<vmem>>, vector<16x64xf32>,
    %c1_114 = arith.constant 1 : index
    %c0_115 = arith.constant 0 : index
    %c0_116 = arith.constant 0 : index
    %128 = vector.load %arg5[%c1_114, %c0_115, %c0_116] : memref<3x16x144xf32, #tpu.memory_space<vmem>>, vector<1x16x144xf32>
    %129 = vector.shape_cast %128 : vector<1x16x144xf32> to vector<16x144xf32>
    %c0_117 = arith.constant 0 : index
    %c0_118 = arith.constant 0 : index
    %130 = vector.load %arg14[%c0_117, %c0_118] : memref<144x256xf32, #tpu.memory_space<vmem>>, vector<144x64xf32>
    %cst_119 = arith.constant dense<0.000000e+00> : vector<16x64xf32>
    %131 = tpu.matmul %129, %130, %cst_119 {dimension_numbers = #tpu.dot_dimension_numbers<[1], [0], [0], [1], [0, 0, 1, 1], [], []>} : vector<16x144xf32>, vector<144x64xf32>, vector<16x64xf32> -> vector<16x64xf32>
    %c0_120 = arith.constant 0 : index
    %c4 = arith.constant 4 : index
    %132 = vector.load %arg6[%c0_120, %c4] : memref<16x6xf32, #tpu.memory_space<vmem>>, vector<16x1xf32>
    %133 = vector.broadcast %132 : vector<16x1xf32> to vector<16x64xf32>
    %134 = arith.addf %131, %133 : vector<16x64xf32>
    %c0_121 = arith.constant 0 : index
    %c0_122 = arith.constant 0 : index
    %c0_123 = arith.constant 0 : index
    %135 = vector.load %arg11[%c0_121, %c0_122, %c0_123] : memref<1x16x64xf32, #tpu.memory_space<vmem>>, vector<1x16x64xf32>
    %136 = vector.shape_cast %135 : vector<1x16x64xf32> to vector<16x64xf32>
    %137 = vector.shape_cast %134 : vector<16x64xf32> to vector<1x16x64xf32>
    tpu.vector_store %arg11[%c0_121, %c0_122, %c0_123], %137 {strides = array<i32>} : memref<1x16x64xf32, #tpu.memory_space<vmem>>, vector<1x16x64xf32>,
    %c0_124 = arith.constant 0 : index
    %c128_125 = arith.constant 128 : index
    %138 = vector.load %arg13[%c0_124, %c128_125] : memref<16x401xf32, #tpu.memory_space<vmem>>, vector<16x16xf32>
    tpu.vector_store %arg13[%c0_124, %c128_125], %27 {strides = array<i32>} : memref<16x401xf32, #tpu.memory_space<vmem>>, vector<16x16xf32>,
    %c0_126 = arith.constant 0 : index
    %c123 = arith.constant 123 : index
    %139 = vector.load %arg13[%c0_126, %c123] : memref<16x401xf32, #tpu.memory_space<vmem>>, vector<16x16xf32>
    %c18 = arith.constant 18 : index
    %c0_127 = arith.constant 0 : index
    %140 = vector.load %arg9[%c18, %c0_127] : memref<27x256xf32, #tpu.memory_space<vmem>>, vector<1x16xf32>
    %141 = vector.broadcast %140 : vector<1x16xf32> to vector<16x16xf32>
    %142 = arith.mulf %139, %141 : vector<16x16xf32>
    %c0_128 = arith.constant 0 : index
    %c0_129 = arith.constant 0 : index
    %143 = vector.load %arg14[%c0_128, %c0_129] : memref<144x256xf32, #tpu.memory_space<vmem>>, vector<16x16xf32>
    tpu.vector_store %arg14[%c0_128, %c0_129], %142 {strides = array<i32>} : memref<144x256xf32, #tpu.memory_space<vmem>>, vector<16x16xf32>,
    %c0_130 = arith.constant 0 : index
    %c124 = arith.constant 124 : index
    %144 = vector.load %arg13[%c0_130, %c124] : memref<16x401xf32, #tpu.memory_space<vmem>>, vector<16x16xf32>
    %c19 = arith.constant 19 : index
    %c0_131 = arith.constant 0 : index
    %145 = vector.load %arg9[%c19, %c0_131] : memref<27x256xf32, #tpu.memory_space<vmem>>, vector<1x16xf32>
    %146 = vector.broadcast %145 : vector<1x16xf32> to vector<16x16xf32>
    %147 = arith.mulf %144, %146 : vector<16x16xf32>
    %c16_132 = arith.constant 16 : index
    %c0_133 = arith.constant 0 : index
    %148 = vector.load %arg14[%c16_132, %c0_133] : memref<144x256xf32, #tpu.memory_space<vmem>>, vector<16x16xf32>
    tpu.vector_store %arg14[%c16_132, %c0_133], %147 {strides = array<i32>} : memref<144x256xf32, #tpu.memory_space<vmem>>, vector<16x16xf32>,
    %c0_134 = arith.constant 0 : index
    %c125 = arith.constant 125 : index
    %149 = vector.load %arg13[%c0_134, %c125] : memref<16x401xf32, #tpu.memory_space<vmem>>, vector<16x16xf32>
    %c20 = arith.constant 20 : index
    %c0_135 = arith.constant 0 : index
    %150 = vector.load %arg9[%c20, %c0_135] : memref<27x256xf32, #tpu.memory_space<vmem>>, vector<1x16xf32>
    %151 = vector.broadcast %150 : vector<1x16xf32> to vector<16x16xf32>
    %152 = arith.mulf %149, %151 : vector<16x16xf32>
    %c32_136 = arith.constant 32 : index
    %c0_137 = arith.constant 0 : index
    %153 = vector.load %arg14[%c32_136, %c0_137] : memref<144x256xf32, #tpu.memory_space<vmem>>, vector<16x16xf32>
    tpu.vector_store %arg14[%c32_136, %c0_137], %152 {strides = array<i32>} : memref<144x256xf32, #tpu.memory_space<vmem>>, vector<16x16xf32>,
    %c0_138 = arith.constant 0 : index
    %c127_139 = arith.constant 127 : index
    %154 = vector.load %arg13[%c0_138, %c127_139] : memref<16x401xf32, #tpu.memory_space<vmem>>, vector<16x16xf32>
    %c21 = arith.constant 21 : index
    %c0_140 = arith.constant 0 : index
    %155 = vector.load %arg9[%c21, %c0_140] : memref<27x256xf32, #tpu.memory_space<vmem>>, vector<1x16xf32>
    %156 = vector.broadcast %155 : vector<1x16xf32> to vector<16x16xf32>
    %157 = arith.mulf %154, %156 : vector<16x16xf32>
    %c48_141 = arith.constant 48 : index
    %c0_142 = arith.constant 0 : index
    %158 = vector.load %arg14[%c48_141, %c0_142] : memref<144x256xf32, #tpu.memory_space<vmem>>, vector<16x16xf32>
    tpu.vector_store %arg14[%c48_141, %c0_142], %157 {strides = array<i32>} : memref<144x256xf32, #tpu.memory_space<vmem>>, vector<16x16xf32>,
    %c64_143 = arith.constant 64 : index
    %c0_144 = arith.constant 0 : index
    %159 = vector.load %arg14[%c64_143, %c0_144] : memref<144x256xf32, #tpu.memory_space<vmem>>, vector<16x16xf32>
    tpu.vector_store %arg14[%c64_143, %c0_144], %27 {strides = array<i32>} : memref<144x256xf32, #tpu.memory_space<vmem>>, vector<16x16xf32>,
    %c0_145 = arith.constant 0 : index
    %c129_146 = arith.constant 129 : index
    %160 = vector.load %arg13[%c0_145, %c129_146] : memref<16x401xf32, #tpu.memory_space<vmem>>, vector<16x16xf32>
    %c23 = arith.constant 23 : index
    %c0_147 = arith.constant 0 : index
    %161 = vector.load %arg9[%c23, %c0_147] : memref<27x256xf32, #tpu.memory_space<vmem>>, vector<1x16xf32>
    %162 = vector.broadcast %161 : vector<1x16xf32> to vector<16x16xf32>
    %163 = arith.mulf %160, %162 : vector<16x16xf32>
    %c80_148 = arith.constant 80 : index
    %c0_149 = arith.constant 0 : index
    %164 = vector.load %arg14[%c80_148, %c0_149] : memref<144x256xf32, #tpu.memory_space<vmem>>, vector<16x16xf32>
    tpu.vector_store %arg14[%c80_148, %c0_149], %163 {strides = array<i32>} : memref<144x256xf32, #tpu.memory_space<vmem>>, vector<16x16xf32>,
    %c0_150 = arith.constant 0 : index
    %c131 = arith.constant 131 : index
    %165 = vector.load %arg13[%c0_150, %c131] : memref<16x401xf32, #tpu.memory_space<vmem>>, vector<16x16xf32>
    %c24 = arith.constant 24 : index
    %c0_151 = arith.constant 0 : index
    %166 = vector.load %arg9[%c24, %c0_151] : memref<27x256xf32, #tpu.memory_space<vmem>>, vector<1x16xf32>
    %167 = vector.broadcast %166 : vector<1x16xf32> to vector<16x16xf32>
    %168 = arith.mulf %165, %167 : vector<16x16xf32>
    %c96_152 = arith.constant 96 : index
    %c0_153 = arith.constant 0 : index
    %169 = vector.load %arg14[%c96_152, %c0_153] : memref<144x256xf32, #tpu.memory_space<vmem>>, vector<16x16xf32>
    tpu.vector_store %arg14[%c96_152, %c0_153], %168 {strides = array<i32>} : memref<144x256xf32, #tpu.memory_space<vmem>>, vector<16x16xf32>,
    %c0_154 = arith.constant 0 : index
    %c132 = arith.constant 132 : index
    %170 = vector.load %arg13[%c0_154, %c132] : memref<16x401xf32, #tpu.memory_space<vmem>>, vector<16x16xf32>
    %c25 = arith.constant 25 : index
    %c0_155 = arith.constant 0 : index
    %171 = vector.load %arg9[%c25, %c0_155] : memref<27x256xf32, #tpu.memory_space<vmem>>, vector<1x16xf32>
    %172 = vector.broadcast %171 : vector<1x16xf32> to vector<16x16xf32>
    %173 = arith.mulf %170, %172 : vector<16x16xf32>
    %c112_156 = arith.constant 112 : index
    %c0_157 = arith.constant 0 : index
    %174 = vector.load %arg14[%c112_156, %c0_157] : memref<144x256xf32, #tpu.memory_space<vmem>>, vector<16x16xf32>
    tpu.vector_store %arg14[%c112_156, %c0_157], %173 {strides = array<i32>} : memref<144x256xf32, #tpu.memory_space<vmem>>, vector<16x16xf32>,
    %c0_158 = arith.constant 0 : index
    %c133 = arith.constant 133 : index
    %175 = vector.load %arg13[%c0_158, %c133] : memref<16x401xf32, #tpu.memory_space<vmem>>, vector<16x16xf32>
    %c26 = arith.constant 26 : index
    %c0_159 = arith.constant 0 : index
    %176 = vector.load %arg9[%c26, %c0_159] : memref<27x256xf32, #tpu.memory_space<vmem>>, vector<1x16xf32>
    %177 = vector.broadcast %176 : vector<1x16xf32> to vector<16x16xf32>
    %178 = arith.mulf %175, %177 : vector<16x16xf32>
    %c128_160 = arith.constant 128 : index
    %c0_161 = arith.constant 0 : index
    %179 = vector.load %arg14[%c128_160, %c0_161] : memref<144x256xf32, #tpu.memory_space<vmem>>, vector<16x16xf32>
    tpu.vector_store %arg14[%c128_160, %c0_161], %178 {strides = array<i32>} : memref<144x256xf32, #tpu.memory_space<vmem>>, vector<16x16xf32>,
    %c2_162 = arith.constant 2 : index
    %c0_163 = arith.constant 0 : index
    %c0_164 = arith.constant 0 : index
    %180 = vector.load %arg5[%c2_162, %c0_163, %c0_164] : memref<3x16x144xf32, #tpu.memory_space<vmem>>, vector<1x16x144xf32>
    %181 = vector.shape_cast %180 : vector<1x16x144xf32> to vector<16x144xf32>
    %c0_165 = arith.constant 0 : index
    %c0_166 = arith.constant 0 : index
    %182 = vector.load %arg14[%c0_165, %c0_166] : memref<144x256xf32, #tpu.memory_space<vmem>>, vector<144x16xf32>
    %cst_167 = arith.constant dense<0.000000e+00> : vector<16x16xf32>
    %183 = tpu.matmul %181, %182, %cst_167 {dimension_numbers = #tpu.dot_dimension_numbers<[1], [0], [0], [1], [0, 0, 1, 1], [], []>} : vector<16x144xf32>, vector<144x16xf32>, vector<16x16xf32> -> vector<16x16xf32>
    %c0_168 = arith.constant 0 : index
    %c5_169 = arith.constant 5 : index
    %184 = vector.load %arg6[%c0_168, %c5_169] : memref<16x6xf32, #tpu.memory_space<vmem>>, vector<16x1xf32>
    %185 = vector.broadcast %184 : vector<16x1xf32> to vector<16x16xf32>
    %186 = arith.addf %183, %185 : vector<16x16xf32>
    %c0_170 = arith.constant 0 : index
    %c0_171 = arith.constant 0 : index
    %c0_172 = arith.constant 0 : index
    %187 = vector.load %arg12[%c0_170, %c0_171, %c0_172] : memref<1x16x16xf32, #tpu.memory_space<vmem>>, vector<1x16x16xf32>
    %188 = vector.shape_cast %187 : vector<1x16x16xf32> to vector<16x16xf32>
    %189 = vector.shape_cast %186 : vector<16x16xf32> to vector<1x16x16xf32>
    tpu.vector_store %arg12[%c0_170, %c0_171, %c0_172], %189 {strides = array<i32>} : memref<1x16x16xf32, #tpu.memory_space<vmem>>, vector<1x16x16xf32>,
    return
  }
  func.func @transform_0(%arg0: i32) -> (i32, i32, i32) {
    %c0_i32 = arith.constant 0 : i32
    %c0_i32_0 = arith.constant 0 : i32
    %c0_i32_1 = arith.constant 0 : i32
    return %arg0, %c0_i32, %c0_i32_0 : i32, i32, i32
  }
  func.func @transform_1(%arg0: i32) -> (i32, i32, i32) {
    %c0_i32 = arith.constant 0 : i32
    %c0_i32_0 = arith.constant 0 : i32
    %c0_i32_1 = arith.constant 0 : i32
    return %arg0, %c0_i32, %c0_i32_0 : i32, i32, i32
  }
  func.func @transform_2(%arg0: i32) -> (i32, i32, i32) {
    %c0_i32 = arith.constant 0 : i32
    %c0_i32_0 = arith.constant 0 : i32
    %c0_i32_1 = arith.constant 0 : i32
    return %arg0, %c0_i32, %c0_i32_0 : i32, i32, i32
  }
  func.func @transform_3(%arg0: i32) -> (i32, i32, i32) {
    %c0_i32 = arith.constant 0 : i32
    %c0_i32_0 = arith.constant 0 : i32
    %c0_i32_1 = arith.constant 0 : i32
    %c0_i32_2 = arith.constant 0 : i32
    return %c0_i32, %c0_i32_0, %c0_i32_1 : i32, i32, i32
  }
  func.func @transform_4(%arg0: i32) -> (i32, i32, i32) {
    %c0_i32 = arith.constant 0 : i32
    %c0_i32_0 = arith.constant 0 : i32
    %c0_i32_1 = arith.constant 0 : i32
    %c0_i32_2 = arith.constant 0 : i32
    return %c0_i32, %c0_i32_0, %c0_i32_1 : i32, i32, i32
  }
  func.func @transform_5(%arg0: i32) -> (i32, i32) {
    %c0_i32 = arith.constant 0 : i32
    %c0_i32_0 = arith.constant 0 : i32
    %c0_i32_1 = arith.constant 0 : i32
    return %c0_i32, %c0_i32_0 : i32, i32
  }
  func.func @transform_6(%arg0: i32) -> (i32, i32) {
    %c0_i32 = arith.constant 0 : i32
    %c0_i32_0 = arith.constant 0 : i32
    %c0_i32_1 = arith.constant 0 : i32
    return %c0_i32, %c0_i32_0 : i32, i32
  }
  func.func @transform_7(%arg0: i32) -> (i32, i32) {
    %c0_i32 = arith.constant 0 : i32
    %c0_i32_0 = arith.constant 0 : i32
    %c0_i32_1 = arith.constant 0 : i32
    return %c0_i32, %c0_i32_0 : i32, i32
  }
  func.func @transform_8(%arg0: i32) -> (i32, i32) {
    %c0_i32 = arith.constant 0 : i32
    %c0_i32_0 = arith.constant 0 : i32
    %c0_i32_1 = arith.constant 0 : i32
    return %c0_i32, %c0_i32_0 : i32, i32
  }
  func.func @transform_9(%arg0: i32) -> (i32, i32, i32) {
    %c0_i32 = arith.constant 0 : i32
    %c0_i32_0 = arith.constant 0 : i32
    %c0_i32_1 = arith.constant 0 : i32
    return %arg0, %c0_i32, %c0_i32_0 : i32, i32, i32
  }
  func.func @transform_10(%arg0: i32) -> (i32, i32, i32) {
    %c0_i32 = arith.constant 0 : i32
    %c0_i32_0 = arith.constant 0 : i32
    %c0_i32_1 = arith.constant 0 : i32
    return %arg0, %c0_i32, %c0_i32_0 : i32, i32, i32
  }
  func.func @transform_11(%arg0: i32) -> (i32, i32, i32) {
    %c0_i32 = arith.constant 0 : i32
    %c0_i32_0 = arith.constant 0 : i32
    %c0_i32_1 = arith.constant 0 : i32
    return %arg0, %c0_i32, %c0_i32_0 : i32, i32, i32
  }
}

</mosaic_0001>

<llo_original>
// kernel: tpu_custom_call.1
$region0: #{tpu_custom_call.1}
  #allocation0 [shape = 'u32[]', space=smem, size = 0x4, offset = 0x4, fixed_abs, tag = 'smem constant byte address 0x4 - core index']
  #allocation1 [shape = 'u32[72,128]{1,0:T(1,128)}', space=vmem, size = 0x9000, scoped, tag = 'internal scratch']
  #allocation2 [shape = 'f32[16,401]{1,0:T(8,128)}', space=vmem, size = 0x8000, scoped, tag = 'scratch operand']
  #allocation3 [shape = 'f32[144,256]{1,0:T(8,128)}', space=vmem, size = 0x24000, scoped, tag = 'scratch operand']
  %s0 = inlined_call_operand.hbm [shape: f32[2,8,256], index: 0, kind: input, shape index: {}]
  %s1 = inlined_call_operand.hbm [shape: f32[2,16,64], index: 1, kind: input, shape index: {}]
  %s2 = inlined_call_operand.vmem [shape: f32[2,32,16], index: 2, kind: input, shape index: {}]
  %s3 = inlined_call_operand.hbm [shape: f32[3,16,32], index: 3, kind: input, shape index: {}]
  %s4 = inlined_call_operand.vmem [shape: f32[3,16,144], index: 4, kind: input, shape index: {}]
  %s5 = inlined_call_operand.vmem [shape: f32[16,6], index: 5, kind: input, shape index: {}]
  %s6 = inlined_call_operand.hbm [shape: f32[64,256], index: 6, kind: input, shape index: {}]
  %s7 = inlined_call_operand.vmem [shape: f32[16,64], index: 7, kind: input, shape index: {}]
  %s8 = inlined_call_operand.hbm [shape: f32[27,256], index: 8, kind: input, shape index: {}]
  %s9 = inlined_call_operand.hbm [shape: f32[2,16,256], index: 9, kind: output, shape index: {0}]
  %s10 = inlined_call_operand.hbm [shape: f32[2,16,64], index: 10, kind: output, shape index: {1}]
  %s11 = inlined_call_operand.hbm [shape: f32[2,16,16], index: 11, kind: output, shape index: {2}]
  %12 = xla_tuple %s9, %s10, %s11
  %s13 = sld [smem:[#allocation0]]
  $region105: #{tpu_custom_call.1} parent=0
    _
  %s15 = ssub.s32 1, %s13
  %s16 = scalar_select 0, %s15, %s13
  $region1: #{tpu_custom_call.1} parent=0
    #allocation4 [shape = 'u8[16384]{0}', space=vmem, size = 0x4000, scoped, tag = 'input window, operand 0']
    #allocation5 [shape = 's32[2]{0}', space=sflag, size = 0x8, scoped, tag = 'scoped memory for tpu_custom_call.1']
    #allocation6 [shape = 's32[2]{0}', space=sflag, size = 0x8, scoped, tag = 'scoped memory for tpu_custom_call.1']
    #allocation7 [shape = 'u8[16384]{0}', space=vmem, size = 0x4000, scoped, tag = 'input window, operand 1']
    #allocation8 [shape = 's32[2]{0}', space=sflag, size = 0x8, scoped, tag = 'scoped memory for tpu_custom_call.1']
    #allocation9 [shape = 'u8[24576]{0}', space=vmem, size = 0x6000, scoped, tag = 'input window, operand 3, single buffered']
    #allocation10 [shape = 'u8[65536]{0}', space=vmem, size = 0x10000, scoped, tag = 'input window, operand 6, single buffered']
    #allocation11 [shape = 's32[1]{0}', space=sflag, size = 0x4, scoped, tag = 'scoped memory for tpu_custom_call.1']
    #allocation12 [shape = 'u8[32768]{0}', space=vmem, size = 0x8000, scoped, tag = 'input window, operand 8, single buffered']
    #allocation13 [shape = 'u8[32768]{0}', space=vmem, size = 0x8000, scoped, tag = 'output window, operand 0']
    #allocation14 [shape = 'u8[16384]{0}', space=vmem, size = 0x4000, scoped, tag = 'output window, operand 1']
    #allocation15 [shape = 's32[2]{0}', space=sflag, size = 0x8, scoped, tag = 'scoped memory for tpu_custom_call.1']
    #allocation16 [shape = 'u8[16384]{0}', space=vmem, size = 0x4000, scoped, tag = 'output window, operand 2']
    %17 = vsyncpa [#allocation5], 0
    %s18 = scalar_lea.sflag [#allocation5], 1
    %19 = vsyncpa %s18, 0
    %20 = vsyncpa [#allocation8], 0
    %s21 = scalar_lea.sflag [#allocation8], 1
    %22 = vsyncpa %s21, 0
    %23 = vsyncpa [#allocation11], 0
    %24 = vsyncpa [#allocation6], 0
    %s25 = scalar_lea.sflag [#allocation6], 1
    %26 = vsyncpa %s25, 0
    %27 = vsyncpa [#allocation15], 0
    %s28 = scalar_lea.sflag [#allocation15], 1
    %29 = vsyncpa %s28, 0
    loop: start=0, step=1, limit=4
    $region2: #{tpu_custom_call.1} parent=1 // loop_pre_header
      _
    $region3: #{tpu_custom_call.1} parent=1 // loop_header
      %s31 = sphi 0, %s35
      %p32 = scmp.ge.s32.totalorder %s31, 4
      %s41 = sphi 0, %s43
      %s44 = sphi 0, %s41
      %s45 = sphi 0, %s44
      %s61 = sphi 0, %s45
      %s67 = sphi 0, %s69
      %s70 = sphi 0, %s67
      %s71 = sphi 0, %s70
      %s87 = sphi 0, %s71
      %s93 = sphi 0, %s95
      %s96 = sphi 0, %s93
      %s97 = sphi 0, %s96
      %s113 = sphi 0, %s97
      %s117 = sphi 0, %s117
      %s119 = sphi 0, %s117
      %s120 = sphi 0, %s119
      %s134 = sphi 0, %s120
      %s138 = sphi 0, %s138
      %s140 = sphi 0, %s138
      %s141 = sphi 0, %s140
      %s155 = sphi 0, %s141
      %s159 = sphi 0, %s159
      %s161 = sphi 0, %s159
      %s162 = sphi 0, %s161
      %s176 = sphi 0, %s162
      %s180 = sphi 0, %s180
      %s182 = sphi 0, %s180
      %s183 = sphi 0, %s182
      %s197 = sphi 0, %s183
      %s201 = sphi 0, %s201
      %s203 = sphi 0, %s201
      %s204 = sphi 0, %s203
      %s218 = sphi 0, %s204
      %s222 = sphi 0, %s222
      %s224 = sphi 0, %s222
      %s225 = sphi 0, %s224
      %s239 = sphi 0, %s225
      %s245 = sphi 0, %s247
      %s248 = sphi 0, %s245
      %s249 = sphi 0, %s248
      %s265 = sphi 0, %s249
      %s271 = sphi 0, %s273
      %s274 = sphi 0, %s271
      %s275 = sphi 0, %s274
      %s291 = sphi 0, %s275
      %s297 = sphi 0, %s299
      %s300 = sphi 0, %s297
      %s301 = sphi 0, %s300
      %s317 = sphi 0, %s301
    $region4: #{tpu_custom_call.1} parent=1 // loop_header_branch
      %34 = sbr.rel (%p32) target = $region8
    $region5: #{tpu_custom_call.1} parent=1 // loop_body
      %s36 = ssub.s32 %s31, 1
      %s37 = ssub.s32 %s31, 2
      %s38 = sadd.s32 %s31, 1
      %s39 = ssub.s32 %s31, %s38
      %p40 = scmp.eq.s32.totalorder %s39, 0
      %s42 = sadd.s32 %s41, 1
      %s43 = scalar_select %p40, %s41, %s42
      %p46 = pneg %p40
      %p47 = scmp.eq.s32.totalorder %s31, 1
      %p48 = por %p46, %p47
      %p49 = scmp.ne.s32.totalorder %s41, %s44
      %p50 = scmp.eq.s32.totalorder %s31, 0
      %p51 = por %p49, %p50
      %p52 = scmp.ne.s32.totalorder %s41, %s44
      %p53 = scmp.eq.s32.totalorder %s36, 1
      %p54 = por %p52, %p53
      %p55 = scmp.ne.s32.totalorder %s44, %s45
      %p56 = scmp.eq.s32.totalorder %s36, 0
      %p57 = por %p55, %p56
      %p58 = scmp.ne.s32.totalorder %s44, %s45
      %p59 = scmp.eq.s32.totalorder %s37, 1
      %p60 = por %p58, %p59
      %p62 = scmp.ne.s32.totalorder %s45, %s61
      %p63 = scmp.eq.s32.totalorder %s37, 0
      %p64 = por %p62, %p63
      %s65 = ssub.s32 %s31, %s38
      %p66 = scmp.eq.s32.totalorder %s65, 0
      %s68 = sadd.s32 %s67, 1
      %s69 = scalar_select %p66, %s67, %s68
      %p72 = pneg %p66
      %p73 = scmp.eq.s32.totalorder %s31, 1
      %p74 = por %p72, %p73
      %p75 = scmp.ne.s32.totalorder %s67, %s70
      %p76 = scmp.eq.s32.totalorder %s31, 0
      %p77 = por %p75, %p76
      %p78 = scmp.ne.s32.totalorder %s67, %s70
      %p79 = scmp.eq.s32.totalorder %s36, 1
      %p80 = por %p78, %p79
      %p81 = scmp.ne.s32.totalorder %s70, %s71
      %p82 = scmp.eq.s32.totalorder %s36, 0
      %p83 = por %p81, %p82
      %p84 = scmp.ne.s32.totalorder %s70, %s71
      %p85 = scmp.eq.s32.totalorder %s37, 1
      %p86 = por %p84, %p85
      %p88 = scmp.ne.s32.totalorder %s71, %s87
      %p89 = scmp.eq.s32.totalorder %s37, 0
      %p90 = por %p88, %p89
      %s91 = ssub.s32 %s31, %s38
      %p92 = scmp.eq.s32.totalorder %s91, 0
      %s94 = sadd.s32 %s93, 1
      %s95 = scalar_select %p92, %s93, %s94
      %p98 = pneg %p92
      %p99 = scmp.eq.s32.totalorder %s31, 1
      %p100 = por %p98, %p99
      %p101 = scmp.ne.s32.totalorder %s93, %s96
      %p102 = scmp.eq.s32.totalorder %s31, 0
      %p103 = por %p101, %p102
      %p104 = scmp.ne.s32.totalorder %s93, %s96
      %p105 = scmp.eq.s32.totalorder %s36, 1
      %p106 = por %p104, %p105
      %p107 = scmp.ne.s32.totalorder %s96, %s97
      %p108 = scmp.eq.s32.totalorder %s36, 0
      %p109 = por %p107, %p108
      %p110 = scmp.ne.s32.totalorder %s96, %s97
      %p111 = scmp.eq.s32.totalorder %s37, 1
      %p112 = por %p110, %p111
      %p114 = scmp.ne.s32.totalorder %s97, %s113
      %p115 = scmp.eq.s32.totalorder %s37, 0
      %p116 = por %p114, %p115
      %s118 = sadd.s32 %s117, 1
      %p121 = scmp.eq.s32.totalorder %s31, 1
      %p122 = scmp.ne.s32.totalorder %s117, %s119
      %p123 = scmp.eq.s32.totalorder %s31, 0
      %p124 = por %p122, %p123
      %p125 = scmp.ne.s32.totalorder %s117, %s119
      %p126 = scmp.eq.s32.totalorder %s36, 1
      %p127 = por %p125, %p126
      %p128 = scmp.ne.s32.totalorder %s119, %s120
      %p129 = scmp.eq.s32.totalorder %s36, 0
      %p130 = por %p128, %p129
      %p131 = scmp.ne.s32.totalorder %s119, %s120
      %p132 = scmp.eq.s32.totalorder %s37, 1
      %p133 = por %p131, %p132
      %p135 = scmp.ne.s32.totalorder %s120, %s134
      %p136 = scmp.eq.s32.totalorder %s37, 0
      %p137 = por %p135, %p136
      %s139 = sadd.s32 %s138, 1
      %p142 = scmp.eq.s32.totalorder %s31, 1
      %p143 = scmp.ne.s32.totalorder %s138, %s140
      %p144 = scmp.eq.s32.totalorder %s31, 0
      %p145 = por %p143, %p144
      %p146 = scmp.ne.s32.totalorder %s138, %s140
      %p147 = scmp.eq.s32.totalorder %s36, 1
      %p148 = por %p146, %p147
      %p149 = scmp.ne.s32.totalorder %s140, %s141
      %p150 = scmp.eq.s32.totalorder %s36, 0
      %p151 = por %p149, %p150
      %p152 = scmp.ne.s32.totalorder %s140, %s141
      %p153 = scmp.eq.s32.totalorder %s37, 1
      %p154 = por %p152, %p153
      %p156 = scmp.ne.s32.totalorder %s141, %s155
      %p157 = scmp.eq.s32.totalorder %s37, 0
      %p158 = por %p156, %p157
      %s160 = sadd.s32 %s159, 1
      %p163 = scmp.eq.s32.totalorder %s31, 1
      %p164 = scmp.ne.s32.totalorder %s159, %s161
      %p165 = scmp.eq.s32.totalorder %s31, 0
      %p166 = por %p164, %p165
      %p167 = scmp.ne.s32.totalorder %s159, %s161
      %p168 = scmp.eq.s32.totalorder %s36, 1
      %p169 = por %p167, %p168
      %p170 = scmp.ne.s32.totalorder %s161, %s162
      %p171 = scmp.eq.s32.totalorder %s36, 0
      %p172 = por %p170, %p171
      %p173 = scmp.ne.s32.totalorder %s161, %s162
      %p174 = scmp.eq.s32.totalorder %s37, 1
      %p175 = por %p173, %p174
      %p177 = scmp.ne.s32.totalorder %s162, %s176
      %p178 = scmp.eq.s32.totalorder %s37, 0
      %p179 = por %p177, %p178
      %s181 = sadd.s32 %s180, 1
      %p184 = scmp.eq.s32.totalorder %s31, 1
      %p185 = scmp.ne.s32.totalorder %s180, %s182
      %p186 = scmp.eq.s32.totalorder %s31, 0
      %p187 = por %p185, %p186
      %p188 = scmp.ne.s32.totalorder %s180, %s182
      %p189 = scmp.eq.s32.totalorder %s36, 1
      %p190 = por %p188, %p189
      %p191 = scmp.ne.s32.totalorder %s182, %s183
      %p192 = scmp.eq.s32.totalorder %s36, 0
      %p193 = por %p191, %p192
      %p194 = scmp.ne.s32.totalorder %s182, %s183
      %p195 = scmp.eq.s32.totalorder %s37, 1
      %p196 = por %p194, %p195
      %p198 = scmp.ne.s32.totalorder %s183, %s197
      %p199 = scmp.eq.s32.totalorder %s37, 0
      %p200 = por %p198, %p199
      %s202 = sadd.s32 %s201, 1
      %p205 = scmp.eq.s32.totalorder %s31, 1
      %p206 = scmp.ne.s32.totalorder %s201, %s203
      %p207 = scmp.eq.s32.totalorder %s31, 0
      %p208 = por %p206, %p207
      %p209 = scmp.ne.s32.totalorder %s201, %s203
      %p210 = scmp.eq.s32.totalorder %s36, 1
      %p211 = por %p209, %p210
      %p212 = scmp.ne.s32.totalorder %s203, %s204
      %p213 = scmp.eq.s32.totalorder %s36, 0
      %p214 = por %p212, %p213
      %p215 = scmp.ne.s32.totalorder %s203, %s204
      %p216 = scmp.eq.s32.totalorder %s37, 1
      %p217 = por %p215, %p216
      %p219 = scmp.ne.s32.totalorder %s204, %s218
      %p220 = scmp.eq.s32.totalorder %s37, 0
      %p221 = por %p219, %p220
      %s223 = sadd.s32 %s222, 1
      %p226 = scmp.eq.s32.totalorder %s31, 1
      %p227 = scmp.ne.s32.totalorder %s222, %s224
      %p228 = scmp.eq.s32.totalorder %s31, 0
      %p229 = por %p227, %p228
      %p230 = scmp.ne.s32.totalorder %s222, %s224
      %p231 = scmp.eq.s32.totalorder %s36, 1
      %p232 = por %p230, %p231
      %p233 = scmp.ne.s32.totalorder %s224, %s225
      %p234 = scmp.eq.s32.totalorder %s36, 0
      %p235 = por %p233, %p234
      %p236 = scmp.ne.s32.totalorder %s224, %s225
      %p237 = scmp.eq.s32.totalorder %s37, 1
      %p238 = por %p236, %p237
      %p240 = scmp.ne.s32.totalorder %s225, %s239
      %p241 = scmp.eq.s32.totalorder %s37, 0
      %p242 = por %p240, %p241
      %s243 = ssub.s32 %s31, %s38
      %p244 = scmp.eq.s32.totalorder %s243, 0
      %s246 = sadd.s32 %s245, 1
      %s247 = scalar_select %p244, %s245, %s246
      %p250 = pneg %p244
      %p251 = scmp.eq.s32.totalorder %s31, 1
      %p252 = por %p250, %p251
      %p253 = scmp.ne.s32.totalorder %s245, %s248
      %p254 = scmp.eq.s32.totalorder %s31, 0
      %p255 = por %p253, %p254
      %p256 = scmp.ne.s32.totalorder %s245, %s248
      %p257 = scmp.eq.s32.totalorder %s36, 1
      %p258 = por %p256, %p257
      %p259 = scmp.ne.s32.totalorder %s248, %s249
      %p260 = scmp.eq.s32.totalorder %s36, 0
      %p261 = por %p259, %p260
      %p262 = scmp.ne.s32.totalorder %s248, %s249
      %p263 = scmp.eq.s32.totalorder %s37, 1
      %p264 = por %p262, %p263
      %p266 = scmp.ne.s32.totalorder %s249, %s265
      %p267 = scmp.eq.s32.totalorder %s37, 0
      %p268 = por %p266, %p267
      %s269 = ssub.s32 %s31, %s38
      %p270 = scmp.eq.s32.totalorder %s269, 0
      %s272 = sadd.s32 %s271, 1
      %s273 = scalar_select %p270, %s271, %s272
      %p276 = pneg %p270
      %p277 = scmp.eq.s32.totalorder %s31, 1
      %p278 = por %p276, %p277
      %p279 = scmp.ne.s32.totalorder %s271, %s274
      %p280 = scmp.eq.s32.totalorder %s31, 0
      %p281 = por %p279, %p280
      %p282 = scmp.ne.s32.totalorder %s271, %s274
      %p283 = scmp.eq.s32.totalorder %s36, 1
      %p284 = por %p282, %p283
      %p285 = scmp.ne.s32.totalorder %s274, %s275
      %p286 = scmp.eq.s32.totalorder %s36, 0
      %p287 = por %p285, %p286
      %p288 = scmp.ne.s32.totalorder %s274, %s275
      %p289 = scmp.eq.s32.totalorder %s37, 1
      %p290 = por %p288, %p289
      %p292 = scmp.ne.s32.totalorder %s275, %s291
      %p293 = scmp.eq.s32.totalorder %s37, 0
      %p294 = por %p292, %p293
      %s295 = ssub.s32 %s31, %s38
      %p296 = scmp.eq.s32.totalorder %s295, 0
      %s298 = sadd.s32 %s297, 1
      %s299 = scalar_select %p296, %s297, %s298
      %p302 = pneg %p296
      %p303 = scmp.eq.s32.totalorder %s31, 1
      %p304 = por %p302, %p303
      %p305 = scmp.ne.s32.totalorder %s297, %s300
      %p306 = scmp.eq.s32.totalorder %s31, 0
      %p307 = por %p305, %p306
      %p308 = scmp.ne.s32.totalorder %s297, %s300
      %p309 = scmp.eq.s32.totalorder %s36, 1
      %p310 = por %p308, %p309
      %p311 = scmp.ne.s32.totalorder %s300, %s301
      %p312 = scmp.eq.s32.totalorder %s36, 0
      %p313 = por %p311, %p312
      %p314 = scmp.ne.s32.totalorder %s300, %s301
      %p315 = scmp.eq.s32.totalorder %s37, 1
      %p316 = por %p314, %p315
      %p318 = scmp.ne.s32.totalorder %s301, %s317
      %p319 = scmp.eq.s32.totalorder %s37, 0
      %p320 = por %p318, %p319
      %p321 = scmp.le.s32.totalorder 1, %s31
      %p322 = scmp.lt.s32.totalorder %s31, 3
      %p323 = pnand %p321, %p322
      %p324 = pneg %p323
      // Predicated region
      $region9: #{tpu_custom_call.1} parent=5 // pred_check
        _
      $region10: #{tpu_custom_call.1} parent=5 // pred_check_branch
        %326 = sbr.rel (%p323) target = $region12
      $region11: #{tpu_custom_call.1} parent=5 // pred_region
        %s327 = ssub.s32 %s31, 1
        // Predicated region
        $region13: #{tpu_custom_call.1} parent=11 // pred_check
          %p328 = pneg %p130
        $region14: #{tpu_custom_call.1} parent=11 // pred_check_branch
          %330 = sbr.rel (%p328) target = $region16
        $region15: #{tpu_custom_call.1} parent=11 // pred_region
          %332 = vsyncadd [#allocation8], 0
          %s333 = sshll.u32 %s3, 4
          %s334 = int_to_ptr.hbm [resolvable:$true] %s333
          %s335 = sshll.u32 [#allocation9], 4
          %s336 = int_to_ptr.vmem [resolvable:$true] %s335
          %341 = dma.hbm_to_vmem [thread:$0]  %s334, 768, %s336, [#allocation8], 128, 128, 8
        $region16: #{tpu_custom_call.1} parent=11 // pred_fallthru
          _
        // Predicated region
        $region17: #{tpu_custom_call.1} parent=11 // pred_check
          %p342 = pneg %p151
        $region18: #{tpu_custom_call.1} parent=11 // pred_check_branch
          %344 = sbr.rel (%p342) target = $region20
        $region19: #{tpu_custom_call.1} parent=11 // pred_region
          _
        $region20: #{tpu_custom_call.1} parent=11 // pred_fallthru
          _
        // Predicated region
        $region21: #{tpu_custom_call.1} parent=11 // pred_check
          %p345 = pneg %p172
        $region22: #{tpu_custom_call.1} parent=11 // pred_check_branch
          %347 = sbr.rel (%p345) target = $region24
        $region23: #{tpu_custom_call.1} parent=11 // pred_region
          _
        $region24: #{tpu_custom_call.1} parent=11 // pred_fallthru
          _
        // Predicated region
        $region25: #{tpu_custom_call.1} parent=11 // pred_check
          %p348 = pneg %p193
        $region26: #{tpu_custom_call.1} parent=11 // pred_check_branch
          %350 = sbr.rel (%p348) target = $region28
        $region27: #{tpu_custom_call.1} parent=11 // pred_region
          %352 = vsyncadd [#allocation11], 0
          %s353 = sshll.u32 %s6, 4
          %s354 = int_to_ptr.hbm [resolvable:$true] %s353
          %s355 = sshll.u32 [#allocation10], 4
          %s356 = int_to_ptr.vmem [resolvable:$true] %s355
          %361 = dma.hbm_to_vmem [thread:$0]  %s354, 2048, %s356, [#allocation11], 256, 256, 16
        $region28: #{tpu_custom_call.1} parent=11 // pred_fallthru
          _
        // Predicated region
        $region29: #{tpu_custom_call.1} parent=11 // pred_check
          %p362 = pneg %p214
        $region30: #{tpu_custom_call.1} parent=11 // pred_check_branch
          %364 = sbr.rel (%p362) target = $region32
        $region31: #{tpu_custom_call.1} parent=11 // pred_region
          _
        $region32: #{tpu_custom_call.1} parent=11 // pred_fallthru
          _
        // Predicated region
        $region33: #{tpu_custom_call.1} parent=11 // pred_check
          %p365 = pneg %p235
        $region34: #{tpu_custom_call.1} parent=11 // pred_check_branch
          %367 = sbr.rel (%p365) target = $region36
        $region35: #{tpu_custom_call.1} parent=11 // pred_region
          %369 = vsyncadd [#allocation11], 0
          %s370 = sshll.u32 %s8, 4
          %s371 = int_to_ptr.hbm [resolvable:$true] %s370
          %s372 = sshll.u32 [#allocation12], 4
          %s373 = int_to_ptr.vmem [resolvable:$true] %s372
          %378 = dma.hbm_to_vmem [thread:$0]  %s371, 1024, %s373, [#allocation11], 256, 256, 16
        $region36: #{tpu_custom_call.1} parent=11 // pred_fallthru
          _
      $region12: #{tpu_custom_call.1} parent=5 // pred_fallthru
        _
      %p379 = scmp.lt.s32.totalorder %s31, 2
      // Predicated region
      $region37: #{tpu_custom_call.1} parent=5 // pred_check
        %p380 = pneg %p379
      $region38: #{tpu_custom_call.1} parent=5 // pred_check_branch
        %382 = sbr.rel (%p380) target = $region40
      $region39: #{tpu_custom_call.1} parent=5 // pred_region
        // Predicated region
        $region41: #{tpu_custom_call.1} parent=39 // pred_check
          %p383 = pneg %p51
        $region42: #{tpu_custom_call.1} parent=39 // pred_check_branch
          %385 = sbr.rel (%p383) target = $region44
        $region43: #{tpu_custom_call.1} parent=39 // pred_region
          %s386 = sand.u32 %s41, 1
          %s387 = scalar_lea.sflag [#allocation5], %s386
          %s388 = sand.u32 %s41, 1
          %s389 = smul.addr %s388, 16
          %s390 = scalar_lea.vmem [#allocation4], %s389
          %392 = vsyncadd %s387, 0
          %s393 = smul.addr %s31, 2
          %s394 = smul.addr %s393, 8
          %s395 = scalar_lea.hbm %s0, %s394
          %s397 = sshll.u32 %s395, 4
          %s398 = int_to_ptr.hbm [resolvable:$true] %s397
          %s399 = sshll.u32 %s390, 4
          %s400 = int_to_ptr.vmem [resolvable:$true] %s399
          %402 = dma.hbm_to_vmem [thread:$0]  %s398, 256, %s400, %s387
        $region44: #{tpu_custom_call.1} parent=39 // pred_fallthru
          _
        // Predicated region
        $region45: #{tpu_custom_call.1} parent=39 // pred_check
          %p403 = pneg %p77
        $region46: #{tpu_custom_call.1} parent=39 // pred_check_branch
          %405 = sbr.rel (%p403) target = $region48
        $region47: #{tpu_custom_call.1} parent=39 // pred_region
          %s406 = sand.u32 %s31, 1
          %s407 = scalar_lea.sflag [#allocation8], %s406
          %s408 = sand.u32 %s67, 1
          %s409 = smul.addr %s408, 16
          %s410 = scalar_lea.vmem [#allocation7], %s409
          %412 = vsyncadd %s407, 0
          %s413 = smul.addr %s31, 2
          %s414 = smul.addr %s413, 8
          %s415 = scalar_lea.hbm %s1, %s414
          %s416 = sshll.u32 %s415, 4
          %s417 = int_to_ptr.hbm [resolvable:$true] %s416
          %s418 = sshll.u32 %s410, 4
          %s419 = int_to_ptr.vmem [resolvable:$true] %s418
          %424 = dma.hbm_to_vmem [thread:$0]  %s417, 256, %s419, %s407, 128, 128, 8
        $region48: #{tpu_custom_call.1} parent=39 // pred_fallthru
          _
        // Predicated region
        $region49: #{tpu_custom_call.1} parent=39 // pred_check
          %p425 = pneg %p103
        $region50: #{tpu_custom_call.1} parent=39 // pred_check_branch
          %427 = sbr.rel (%p425) target = $region52
        $region51: #{tpu_custom_call.1} parent=39 // pred_region
          %p428 = scmp.lt.s32.totalorder %s31, 1
          %s429 = scalar_select %p428, %s31, 1
          %s430 = smul.addr %s429, 4
          %s431 = smul.addr %s430, 8
          %s432 = scalar_lea.vmem %s2, %s431
        $region52: #{tpu_custom_call.1} parent=39 // pred_fallthru
          _
      $region40: #{tpu_custom_call.1} parent=5 // pred_fallthru
        _
      %p433 = scmp.le.s32.totalorder 1, %s31
      %p434 = scmp.lt.s32.totalorder %s31, 3
      %p435 = pnand %p433, %p434
      %p436 = pneg %p435
      // Predicated region
      $region53: #{tpu_custom_call.1} parent=5 // pred_check
        _
      $region54: #{tpu_custom_call.1} parent=5 // pred_check_branch
        %438 = sbr.rel (%p435) target = $region56
      $region55: #{tpu_custom_call.1} parent=5 // pred_region
        %s439 = ssub.s32 %s31, 1
        %s440 = sand.u32 %s44, 1
        %s441 = scalar_lea.sflag [#allocation5], %s440
        %s442 = sand.u32 %s44, 1
        %s443 = smul.addr %s442, 16
        %s444 = scalar_lea.vmem [#allocation4], %s443
        // Predicated region
        $region57: #{tpu_custom_call.1} parent=55 // pred_check
          %p445 = pneg %p57
        $region58: #{tpu_custom_call.1} parent=55 // pred_check_branch
          %447 = sbr.rel (%p445) target = $region60
        $region59: #{tpu_custom_call.1} parent=55 // pred_region
          %449 = dma.done %s441, 256
        $region60: #{tpu_custom_call.1} parent=55 // pred_fallthru
          _
        %s450 = sand.u32 %s36, 1
        %s451 = scalar_lea.sflag [#allocation8], %s450
        %s452 = sand.u32 %s70, 1
        %s453 = smul.addr %s452, 16
        %s454 = scalar_lea.vmem [#allocation7], %s453
        // Predicated region
        $region61: #{tpu_custom_call.1} parent=55 // pred_check
          %p455 = pneg %p83
        $region62: #{tpu_custom_call.1} parent=55 // pred_check_branch
          %457 = sbr.rel (%p455) target = $region64
        $region63: #{tpu_custom_call.1} parent=55 // pred_region
          %459 = dma.done %s451, 256
        $region64: #{tpu_custom_call.1} parent=55 // pred_fallthru
          _
        // Predicated region
        $region65: #{tpu_custom_call.1} parent=55 // pred_check
          %p460 = pneg %p130
        $region66: #{tpu_custom_call.1} parent=55 // pred_check_branch
          %462 = sbr.rel (%p460) target = $region68
        $region67: #{tpu_custom_call.1} parent=55 // pred_region
          %464 = dma.done [#allocation8], 768
        $region68: #{tpu_custom_call.1} parent=55 // pred_fallthru
          _
        // Predicated region
        $region69: #{tpu_custom_call.1} parent=55 // pred_check
          %p465 = pneg %p193
        $region70: #{tpu_custom_call.1} parent=55 // pred_check_branch
          %467 = sbr.rel (%p465) target = $region72
        $region71: #{tpu_custom_call.1} parent=55 // pred_region
          %469 = dma.done [#allocation11], 2048
        $region72: #{tpu_custom_call.1} parent=55 // pred_fallthru
          _
        // Predicated region
        $region73: #{tpu_custom_call.1} parent=55 // pred_check
          %p470 = pneg %p235
        $region74: #{tpu_custom_call.1} parent=55 // pred_check_branch
          %472 = sbr.rel (%p470) target = $region76
        $region75: #{tpu_custom_call.1} parent=55 // pred_region
          %474 = dma.done [#allocation11], 1024
        $region76: #{tpu_custom_call.1} parent=55 // pred_fallthru
          _
        %s475 = sand.u32 %s44, 1
        %s476 = scalar_lea.sflag [#allocation5], %s475
        %s477 = sand.u32 %s44, 1
        %s478 = smul.addr %s477, 16
        %s479 = scalar_lea.vmem [#allocation4], %s478
        %p480 = pneg %p57
        %p481 = pneg %p54
        %s482 = sand.u32 %s36, 1
        %s483 = scalar_lea.sflag [#allocation8], %s482
        %s484 = sand.u32 %s70, 1
        %s485 = smul.addr %s484, 16
        %s486 = scalar_lea.vmem [#allocation7], %s485
        %p487 = pneg %p83
        %p488 = pneg %p80
        %p489 = scmp.lt.s32.totalorder %s36, 1
        %s490 = scalar_select %p489, %s36, 1
        %s491 = smul.addr %s490, 4
        %s492 = smul.addr %s491, 8
        %s493 = scalar_lea.vmem %s2, %s492
        %p494 = pneg %p109
        %p495 = pneg %p106
        %p496 = pneg %p130
        %p497 = pneg %p127
        %p498 = pneg %p151
        %p499 = pneg %p148
        %p500 = pneg %p172
        %p501 = pneg %p169
        %p502 = pneg %p193
        %p503 = pneg %p190
        %p504 = pneg %p214
        %p505 = pneg %p211
        %p506 = pneg %p235
        %p507 = pneg %p232
        %p508 = pneg %p261
        %p509 = pneg %p258
        %s510 = sand.u32 %s248, 1
        %s511 = scalar_lea.sflag [#allocation6], %s510
        %s512 = sand.u32 %s248, 1
        %s513 = smul.addr %s512, 32
        %s514 = scalar_lea.vmem [#allocation13], %s513
        %p515 = pneg %p287
        %p516 = pneg %p284
        %s517 = sand.u32 %s36, 1
        %s518 = scalar_lea.sflag [#allocation15], %s517
        %s519 = sand.u32 %s274, 1
        %s520 = smul.addr %s519, 16
        %s521 = scalar_lea.vmem [#allocation14], %s520
        %p522 = pneg %p313
        %p523 = pneg %p310
        %s524 = sand.u32 %s36, 1
        %s525 = scalar_lea.sflag [#allocation15], %s524
        %s526 = sand.u32 %s300, 1
        %s527 = smul.addr %s526, 16
        %s528 = scalar_lea.vmem [#allocation16], %s527
        %p529 = scmp.lt.s32.totalorder %s36, 1
        %s530 = scalar_select %p529, %s36, 1
        %s531 = smul.addr %s530, 4
        %s532 = smul.addr %s531, 8
        %s533 = scalar_lea.vmem %s2, %s532
        %534 = vst [vmem:[#allocation2] sm:$0xff] 0.0
        %535 = vst [vmem:[#allocation2 + $0x8] sm:$0xff] 0.0
        %536 = vst [vmem:[#allocation2 + $0x10] sm:$0xff] 0.0
        %vm537 = vcmask 138240
        %538 = vst.msk [vmem:[#allocation2 + $0x18] sm:$0xff] %vm537, 0.0
        %539 = vst [vmem:[#allocation2 + $0x20] sm:$0xff] 0.0
        %540 = vst [vmem:[#allocation2 + $0x28] sm:$0xff] 0.0
        %541 = vst [vmem:[#allocation2 + $0x30] sm:$0xff] 0.0
        %542 = vst.msk [vmem:[#allocation2 + $0x38] sm:$0xff] %vm537, 0.0
        %v543 = vld [vmem:[#allocation9] sm:$0xff]
        %v544 = vld [vmem:[#allocation9 + $0x8] sm:$0xff]
        %v545 = vld [vmem:[%s444] sm:$0xff]
        %v546 = vld [vmem:[%s444 + $0x8] sm:$0xff]
        %v547 = vld [vmem:[%s5] sm:$0xff]
        %v548 = vld [vmem:[%s5 + $0x8] sm:$0xff]
        %550 = vset.pattern.permute.xlu0 0
        %551 = vperm.xlu0 %550, %v547
        %v552 = vpop.permute.xlu0 %551
        %555 = vset.pattern.permute.xlu0 0
        %556 = vperm.xlu0 %555, %v548
        %v557 = vpop.permute.xlu0 %556
        %vm559 = vcmask 64512
        %v561 = vsel %vm559, %v543, 0
        %v564 = vsel %vm559, %v544, 0
        %566 = vmatpush.msra.mxu0 0.0
        %567 = vmatpush.msra.mxu0 0.0
        %568 = vmatpush.msra.mxu0 0.0
        %569 = vmatpush.msra.mxu0 0.0
        %570 = vmatpush.msra.mxu0 0.0
        %571 = vmatpush.msra.mxu0 0.0
        %572 = vmatpush.msra.mxu0 0.0
        %573 = vmatpush.msra.mxu0 0.0
        %574 = vmatpush.msra.mxu0 0.0
        %575 = vmatpush.msra.mxu0 0.0
        %576 = vmatpush.msra.mxu0 0.0
        %577 = vmatpush.msra.mxu0 0.0
        %578 = vmatpush.msra.mxu0 0.0
        %579 = vmatpush.msra.mxu0 0.0
        %580 = vmatpush.msra.mxu0 0.0
        %581 = vmatpush.msra.mxu0 %v545
        %582 = vmatmul.f32.gmra.mxu0 %v561
        %v583 = vpop.f32.mrf.mxu0
        %v584 = vadd.f32 %v552, %v583
        %585 = vmatmul.f32.gmra.mxu0 %v564
        %v586 = vpop.f32.mrf.mxu0
        %v587 = vadd.f32 %v557, %v586
        %588 = vdwg.mxu0
        %589 = vmatpush.msra.mxu0 0.0
        %590 = vmatpush.msra.mxu0 0.0
        %591 = vmatpush.msra.mxu0 0.0
        %592 = vmatpush.msra.mxu0 0.0
        %593 = vmatpush.msra.mxu0 0.0
        %594 = vmatpush.msra.mxu0 0.0
        %595 = vmatpush.msra.mxu0 0.0
        %596 = vmatpush.msra.mxu0 0.0
        %597 = vmatpush.msra.mxu0 0.0
        %598 = vmatpush.msra.mxu0 0.0
        %599 = vmatpush.msra.mxu0 0.0
        %600 = vmatpush.msra.mxu0 0.0
        %601 = vmatpush.msra.mxu0 0.0
        %602 = vmatpush.msra.mxu0 0.0
        %603 = vmatpush.msra.mxu0 0.0
        %604 = vmatpush.msra.mxu0 %v546
        %605 = vmatmul.f32.gmra.mxu0 %v561
        %v606 = vpop.f32.mrf.mxu0
        %v607 = vadd.f32 %v552, %v606
        %608 = vmatmul.f32.gmra.mxu0 %v564
        %v609 = vpop.f32.mrf.mxu0
        %v610 = vadd.f32 %v557, %v609
        %611 = vdwg.mxu0
        %s612 = scalar_lea.vmem [#allocation9], 16
        %v613 = vld [vmem:[%s612] sm:$0xff]
        %v614 = vld [vmem:[%s612 + $0x8] sm:$0xff]
        %v615 = vld [vmem:[%s454] sm:$0xff]
        %v616 = vld [vmem:[%s454 + $0x8] sm:$0xff]
        %617 = vset.pattern.permute.xlu0 1
        %618 = vperm.xlu0 %617, %v547
        %v619 = vpop.permute.xlu0 %618
        %621 = vset.pattern.permute.xlu0 1
        %622 = vperm.xlu0 %621, %v548
        %v623 = vpop.permute.xlu0 %622
        %vm625 = vcmask 130048
        %v627 = vsel %vm625, %v613, 0
        %v630 = vsel %vm625, %v614, 0
        %632 = vmatpush.msra.mxu0 0.0
        %633 = vmatpush.msra.mxu0 0.0
        %634 = vmatpush.msra.mxu0 0.0
        %635 = vmatpush.msra.mxu0 0.0
        %636 = vmatpush.msra.mxu0 0.0
        %637 = vmatpush.msra.mxu0 0.0
        %638 = vmatpush.msra.mxu0 0.0
        %639 = vmatpush.msra.mxu0 0.0
        %640 = vmatpush.msra.mxu0 0.0
        %641 = vmatpush.msra.mxu0 0.0
        %642 = vmatpush.msra.mxu0 0.0
        %643 = vmatpush.msra.mxu0 0.0
        %644 = vmatpush.msra.mxu0 0.0
        %645 = vmatpush.msra.mxu0 0.0
        %646 = vmatpush.msra.mxu0 %v616
        %647 = vmatpush.msra.mxu0 %v615
        %648 = vmatmul.f32.gmra.mxu0 %v627
        %v649 = vpop.f32.mrf.mxu0
        %v650 = vadd.f32 %v619, %v649
        %651 = vmatmul.f32.gmra.mxu0 %v630
        %v652 = vpop.f32.mrf.mxu0
        %v653 = vadd.f32 %v623, %v652
        %654 = vdwg.mxu0
        %s655 = scalar_lea.vmem [#allocation9], 32
        %v656 = vld [vmem:[%s655] sm:$0xff]
        %v657 = vld [vmem:[%s655 + $0x8] sm:$0xff]
        %v658 = vld [vmem:[%s533] sm:$0xff]
        %v659 = vld [vmem:[%s533 + $0x8] sm:$0xff]
        %v660 = vld [vmem:[%s533 + $0x10] sm:$0xff]
        %v661 = vld [vmem:[%s533 + $0x18] sm:$0xff]
        %662 = vset.pattern.permute.xlu0 2
        %663 = vperm.xlu0 %662, %v547
        %v664 = vpop.permute.xlu0 %663
        %666 = vset.pattern.permute.xlu0 2
        %667 = vperm.xlu0 %666, %v548
        %v668 = vpop.permute.xlu0 %667
        %vm670 = vcmask 261120
        %v672 = vsel %vm670, %v656, 0
        %v675 = vsel %vm670, %v657, 0
        %677 = vmatpush.msra.mxu0 0.0
        %678 = vmatpush.msra.mxu0 0.0
        %679 = vmatpush.msra.mxu0 0.0
        %680 = vmatpush.msra.mxu0 0.0
        %681 = vmatpush.msra.mxu0 0.0
        %682 = vmatpush.msra.mxu0 0.0
        %683 = vmatpush.msra.mxu0 0.0
        %684 = vmatpush.msra.mxu0 0.0
        %685 = vmatpush.msra.mxu0 0.0
        %686 = vmatpush.msra.mxu0 0.0
        %687 = vmatpush.msra.mxu0 0.0
        %688 = vmatpush.msra.mxu0 0.0
        %689 = vmatpush.msra.mxu0 %v661
        %690 = vmatpush.msra.mxu0 %v660
        %691 = vmatpush.msra.mxu0 %v659
        %692 = vmatpush.msra.mxu0 %v658
        %693 = vmatmul.f32.gmra.mxu0 %v672
        %v694 = vpop.f32.mrf.mxu0
        %v695 = vadd.f32 %v664, %v694
        %696 = vmatmul.f32.gmra.mxu0 %v675
        %v697 = vpop.f32.mrf.mxu0
        %v698 = vadd.f32 %v668, %v697
        %699 = vdwg.mxu0
        %v700 = vld [vmem:[%s7] sm:$0xff]
        %v701 = vld [vmem:[%s7 + $0x8] sm:$0xff]
        %v703 = vsel %vm625, %v695, 0
        %v706 = vsel %vm625, %v698, 0
        %708 = vmatpush.msra.mxu0 0.0
        %709 = vmatpush.msra.mxu0 0.0
        %710 = vmatpush.msra.mxu0 0.0
        %711 = vmatpush.msra.mxu0 0.0
        %712 = vmatpush.msra.mxu0 0.0
        %713 = vmatpush.msra.mxu0 0.0
        %714 = vmatpush.msra.mxu0 0.0
        %715 = vmatpush.msra.mxu0 0.0
        %716 = vmatpush.msra.mxu0 0.0
        %717 = vmatpush.msra.mxu0 0.0
        %718 = vmatpush.msra.mxu0 0.0
        %719 = vmatpush.msra.mxu0 0.0
        %720 = vmatpush.msra.mxu0 0.0
        %721 = vmatpush.msra.mxu0 0.0
        %722 = vmatpush.msra.mxu0 %v701
        %723 = vmatpush.msra.mxu0 %v700
        %724 = vmatmul.f32.gmra.mxu0 %v703
        %v725 = vpop.f32.mrf.mxu0
        %v726 = vadd.f32 0.0, %v725
        %727 = vmatmul.f32.gmra.mxu0 %v706
        %v728 = vpop.f32.mrf.mxu0
        %v729 = vadd.f32 0.0, %v728
        %730 = vdwg.mxu0
        %v731 = vadd.f32 %v650, %v726
        %v732 = vadd.f32 %v653, %v729
        %v733 = vld [vmem:[#allocation10] sm:$0xff]
        %v734 = vld [vmem:[#allocation10 + $0x8] sm:$0xff]
        %v735 = vld [vmem:[#allocation10 + $0x10] sm:$0xff]
        %v736 = vld [vmem:[#allocation10 + $0x18] sm:$0xff]
        %v737 = vld [vmem:[#allocation10 + $0x20] sm:$0xff]
        %v738 = vld [vmem:[#allocation10 + $0x28] sm:$0xff]
        %v739 = vld [vmem:[#allocation10 + $0x30] sm:$0xff]
        %v740 = vld [vmem:[#allocation10 + $0x38] sm:$0xff]
        %v741 = vld [vmem:[#allocation10 + $0x40] sm:$0xff]
        %v742 = vld [vmem:[#allocation10 + $0x48] sm:$0xff]
        %v743 = vld [vmem:[#allocation10 + $0x50] sm:$0xff]
        %v744 = vld [vmem:[#allocation10 + $0x58] sm:$0xff]
        %v745 = vld [vmem:[#allocation10 + $0x60] sm:$0xff]
        %v746 = vld [vmem:[#allocation10 + $0x68] sm:$0xff]
        %v747 = vld [vmem:[#allocation10 + $0x70] sm:$0xff]
        %v748 = vld [vmem:[#allocation10 + $0x78] sm:$0xff]
        %vm749 = vcmask 523264
        %v751 = vsel %vm749, %v731, 0
        %v754 = vsel %vm749, %v732, 0
        %756 = vmatpush.msra.mxu0 0.0
        %757 = vmatpush.msra.mxu0 0.0
        %758 = vmatpush.msra.mxu0 0.0
        %759 = vmatpush.msra.mxu0 0.0
        %760 = vmatpush.msra.mxu0 0.0
        %761 = vmatpush.msra.mxu0 0.0
        %762 = vmatpush.msra.mxu0 0.0
        %763 = vmatpush.msra.mxu0 0.0
        %764 = vmatpush.msra.mxu0 %v747
        %765 = vmatpush.msra.mxu0 %v745
        %766 = vmatpush.msra.mxu0 %v743
        %767 = vmatpush.msra.mxu0 %v741
        %768 = vmatpush.msra.mxu0 %v739
        %769 = vmatpush.msra.mxu0 %v737
        %770 = vmatpush.msra.mxu0 %v735
        %771 = vmatpush.msra.mxu0 %v733
        %772 = vmatmul.f32.gmra.mxu0 %v751
        %v773 = vpop.f32.mrf.mxu0
        %v774 = vadd.f32 0.0, %v773
        %775 = vmatmul.f32.gmra.mxu0 %v754
        %v776 = vpop.f32.mrf.mxu0
        %v777 = vadd.f32 0.0, %v776
        %778 = vdwg.mxu0
        %779 = vmatpush.msra.mxu0 0.0
        %780 = vmatpush.msra.mxu0 0.0
        %781 = vmatpush.msra.mxu0 0.0
        %782 = vmatpush.msra.mxu0 0.0
        %783 = vmatpush.msra.mxu0 0.0
        %784 = vmatpush.msra.mxu0 0.0
        %785 = vmatpush.msra.mxu0 0.0
        %786 = vmatpush.msra.mxu0 0.0
        %787 = vmatpush.msra.mxu0 %v748
        %788 = vmatpush.msra.mxu0 %v746
        %789 = vmatpush.msra.mxu0 %v744
        %790 = vmatpush.msra.mxu0 %v742
        %791 = vmatpush.msra.mxu0 %v740
        %792 = vmatpush.msra.mxu0 %v738
        %793 = vmatpush.msra.mxu0 %v736
        %794 = vmatpush.msra.mxu0 %v734
        %795 = vmatmul.f32.gmra.mxu0 %v751
        %v796 = vpop.f32.mrf.mxu0
        %v797 = vadd.f32 0.0, %v796
        %798 = vmatmul.f32.gmra.mxu0 %v754
        %v799 = vpop.f32.mrf.mxu0
        %v800 = vadd.f32 0.0, %v799
        %801 = vdwg.mxu0
        %v802 = vadd.f32 %v584, %v774
        %v803 = vadd.f32 %v607, %v797
        %v804 = vadd.f32 %v587, %v777
        %v805 = vadd.f32 %v610, %v800
        %806 = vst [vmem:[#allocation2 + $0x8] sm:$0xff] %v802
        %807 = vst [vmem:[#allocation2 + $0x10] sm:$0xff] %v803
        %808 = vst [vmem:[#allocation2 + $0x28] sm:$0xff] %v804
        %809 = vst [vmem:[#allocation2 + $0x30] sm:$0xff] %v805
        %v810 = vld [vmem:[#allocation2] sm:$0xff]
        %v811 = vld [vmem:[#allocation2 + $0x8] sm:$0xff]
        %v812 = vld [vmem:[#allocation2 + $0x10] sm:$0xff]
        %v813 = vld [vmem:[#allocation2 + $0x20] sm:$0xff]
        %v814 = vld [vmem:[#allocation2 + $0x28] sm:$0xff]
        %v815 = vld [vmem:[#allocation2 + $0x30] sm:$0xff]
        %v816 = vld [vmem:[#allocation12] ss:$8 sm:$0x3]
        %v818 = vperm.slane %v816, 0
        %v819 = vperm.slane %v816, 1
        %820 = vrot.lane.b32.xlu0 %v818, 111
        %v821 = vpop.permute.xlu0 %820
        %822 = vrot.lane.b32.xlu0 %v819, 111
        %v823 = vpop.permute.xlu0 %822
        %vm824 = vcmask 908288
        %v825 = vsel %vm824, %v821, %v823
        %v829 = vmul.f32 %v810, %v821
        %v830 = vmul.f32 %v811, %v825
        %v831 = vmul.f32 %v812, %v823
        %v832 = vmul.f32 %v813, %v821
        %v833 = vmul.f32 %v814, %v825
        %v834 = vmul.f32 %v815, %v823
        %841 = vrot.lane.b32.xlu0 %v829, 17
        %v842 = vpop.permute.xlu0 %841
        %843 = vrot.lane.b32.xlu0 %v830, 17
        %v844 = vpop.permute.xlu0 %843
        %845 = vrot.lane.b32.xlu0 %v831, 17
        %v846 = vpop.permute.xlu0 %845
        %847 = vrot.lane.b32.xlu0 %v832, 17
        %v848 = vpop.permute.xlu0 %847
        %849 = vrot.lane.b32.xlu0 %v833, 17
        %v850 = vpop.permute.xlu0 %849
        %851 = vrot.lane.b32.xlu0 %v834, 17
        %v852 = vpop.permute.xlu0 %851
        %v853 = vsel %vm537, %v842, %v844
        %v854 = vsel %vm537, %v844, %v846
        %v855 = vsel %vm537, %v848, %v850
        %v856 = vsel %vm537, %v850, %v852
        %861 = vst [vmem:[#allocation3] sm:$0xff] %v853
        %862 = vst [vmem:[#allocation3 + $0x8] sm:$0xff] %v854
        %863 = vst [vmem:[#allocation3 + $0x10] sm:$0xff] %v855
        %864 = vst [vmem:[#allocation3 + $0x18] sm:$0xff] %v856
        %v865 = vld [vmem:[#allocation2] sm:$0xff]
        %v866 = vld [vmem:[#allocation2 + $0x8] sm:$0xff]
        %v867 = vld [vmem:[#allocation2 + $0x10] sm:$0xff]
        %v868 = vld [vmem:[#allocation2 + $0x20] sm:$0xff]
        %v869 = vld [vmem:[#allocation2 + $0x28] sm:$0xff]
        %v870 = vld [vmem:[#allocation2 + $0x30] sm:$0xff]
        %s871 = scalar_lea.vmem [#allocation12], 1
        %v872 = vld [vmem:[%s871] ss:$8 sm:$0x3]
        %v874 = vperm.slane %v872, 0
        %v875 = vperm.slane %v872, 1
        %876 = vrot.lane.b32.xlu0 %v874, 112
        %v877 = vpop.permute.xlu0 %876
        %878 = vrot.lane.b32.xlu0 %v875, 112
        %v879 = vpop.permute.xlu0 %878
        %vm880 = vcmask 916480
        %v881 = vsel %vm880, %v877, %v879
        %v885 = vmul.f32 %v865, %v877
        %v886 = vmul.f32 %v866, %v881
        %v887 = vmul.f32 %v867, %v879
        %v888 = vmul.f32 %v868, %v877
        %v889 = vmul.f32 %v869, %v881
        %v890 = vmul.f32 %v870, %v879
        %897 = vrot.lane.b32.xlu0 %v885, 16
        %v898 = vpop.permute.xlu0 %897
        %899 = vrot.lane.b32.xlu0 %v886, 16
        %v900 = vpop.permute.xlu0 %899
        %901 = vrot.lane.b32.xlu0 %v887, 16
        %v902 = vpop.permute.xlu0 %901
        %903 = vrot.lane.b32.xlu0 %v888, 16
        %v904 = vpop.permute.xlu0 %903
        %905 = vrot.lane.b32.xlu0 %v889, 16
        %v906 = vpop.permute.xlu0 %905
        %907 = vrot.lane.b32.xlu0 %v890, 16
        %v908 = vpop.permute.xlu0 %907
        %v909 = vsel %vm625, %v898, %v900
        %v910 = vsel %vm625, %v900, %v902
        %v911 = vsel %vm625, %v904, %v906
        %v912 = vsel %vm625, %v906, %v908
        %917 = vst [vmem:[#allocation3 + $0x20] sm:$0xff] %v909
        %918 = vst [vmem:[#allocation3 + $0x28] sm:$0xff] %v910
        %919 = vst [vmem:[#allocation3 + $0x30] sm:$0xff] %v911
        %920 = vst [vmem:[#allocation3 + $0x38] sm:$0xff] %v912
        %v921 = vld [vmem:[#allocation2] sm:$0xff]
        %v922 = vld [vmem:[#allocation2 + $0x8] sm:$0xff]
        %v923 = vld [vmem:[#allocation2 + $0x10] sm:$0xff]
        %v924 = vld [vmem:[#allocation2 + $0x20] sm:$0xff]
        %v925 = vld [vmem:[#allocation2 + $0x28] sm:$0xff]
        %v926 = vld [vmem:[#allocation2 + $0x30] sm:$0xff]
        %s927 = scalar_lea.vmem [#allocation12], 2
        %v928 = vld [vmem:[%s927] ss:$8 sm:$0x3]
        %v930 = vperm.slane %v928, 0
        %v931 = vperm.slane %v928, 1
        %932 = vrot.lane.b32.xlu0 %v930, 113
        %v933 = vpop.permute.xlu0 %932
        %934 = vrot.lane.b32.xlu0 %v931, 113
        %v935 = vpop.permute.xlu0 %934
        %vm936 = vcmask 924672
        %v937 = vsel %vm936, %v933, %v935
        %v941 = vmul.f32 %v921, %v933
        %v942 = vmul.f32 %v922, %v937
        %v943 = vmul.f32 %v923, %v935
        %v944 = vmul.f32 %v924, %v933
        %v945 = vmul.f32 %v925, %v937
        %v946 = vmul.f32 %v926, %v935
        %953 = vrot.lane.b32.xlu0 %v941, 15
        %v954 = vpop.permute.xlu0 %953
        %955 = vrot.lane.b32.xlu0 %v942, 15
        %v956 = vpop.permute.xlu0 %955
        %957 = vrot.lane.b32.xlu0 %v943, 15
        %v958 = vpop.permute.xlu0 %957
        %959 = vrot.lane.b32.xlu0 %v944, 15
        %v960 = vpop.permute.xlu0 %959
        %961 = vrot.lane.b32.xlu0 %v945, 15
        %v962 = vpop.permute.xlu0 %961
        %963 = vrot.lane.b32.xlu0 %v946, 15
        %v964 = vpop.permute.xlu0 %963
        %vm965 = vcmask 121856
        %v966 = vsel %vm965, %v954, %v956
        %v967 = vsel %vm965, %v956, %v958
        %v968 = vsel %vm965, %v960, %v962
        %v969 = vsel %vm965, %v962, %v964
        %974 = vst [vmem:[#allocation3 + $0x40] sm:$0xff] %v966
        %975 = vst [vmem:[#allocation3 + $0x48] sm:$0xff] %v967
        %976 = vst [vmem:[#allocation3 + $0x50] sm:$0xff] %v968
        %977 = vst [vmem:[#allocation3 + $0x58] sm:$0xff] %v969
        %v978 = vld [vmem:[#allocation2] sm:$0xff]
        %v979 = vld [vmem:[#allocation2 + $0x8] sm:$0xff]
        %v980 = vld [vmem:[#allocation2 + $0x10] sm:$0xff]
        %v981 = vld [vmem:[#allocation2 + $0x20] sm:$0xff]
        %v982 = vld [vmem:[#allocation2 + $0x28] sm:$0xff]
        %v983 = vld [vmem:[#allocation2 + $0x30] sm:$0xff]
        %s984 = scalar_lea.vmem [#allocation12], 3
        %v985 = vld [vmem:[%s984] ss:$8 sm:$0x3]
        %v987 = vperm.slane %v985, 0
        %v988 = vperm.slane %v985, 1
        %989 = vrot.lane.b32.xlu0 %v987, 127
        %v990 = vpop.permute.xlu0 %989
        %991 = vrot.lane.b32.xlu0 %v988, 127
        %v992 = vpop.permute.xlu0 %991
        %vm993 = vcmask 1039360
        %v994 = vsel %vm993, %v990, %v992
        %v998 = vmul.f32 %v978, %v990
        %v999 = vmul.f32 %v979, %v994
        %v1000 = vmul.f32 %v980, %v992
        %v1001 = vmul.f32 %v981, %v990
        %v1002 = vmul.f32 %v982, %v994
        %v1003 = vmul.f32 %v983, %v992
        %1010 = vrot.lane.b32.xlu0 %v998, 1
        %v1011 = vpop.permute.xlu0 %1010
        %1012 = vrot.lane.b32.xlu0 %v999, 1
        %v1013 = vpop.permute.xlu0 %1012
        %1014 = vrot.lane.b32.xlu0 %v1000, 1
        %v1015 = vpop.permute.xlu0 %1014
        %1016 = vrot.lane.b32.xlu0 %v1001, 1
        %v1017 = vpop.permute.xlu0 %1016
        %1018 = vrot.lane.b32.xlu0 %v1002, 1
        %v1019 = vpop.permute.xlu0 %1018
        %1020 = vrot.lane.b32.xlu0 %v1003, 1
        %v1021 = vpop.permute.xlu0 %1020
        %vm1022 = vcmask 7168
        %v1023 = vsel %vm1022, %v1011, %v1013
        %v1024 = vsel %vm1022, %v1013, %v1015
        %v1025 = vsel %vm1022, %v1017, %v1019
        %v1026 = vsel %vm1022, %v1019, %v1021
        %1031 = vst [vmem:[#allocation3 + $0x60] sm:$0xff] %v1023
        %1032 = vst [vmem:[#allocation3 + $0x68] sm:$0xff] %v1024
        %1033 = vst [vmem:[#allocation3 + $0x70] sm:$0xff] %v1025
        %1034 = vst [vmem:[#allocation3 + $0x78] sm:$0xff] %v1026
        %1035 = vst [vmem:[#allocation3 + $0x80] sm:$0xff] %v802
        %1036 = vst [vmem:[#allocation3 + $0x88] sm:$0xff] %v803
        %1037 = vst [vmem:[#allocation3 + $0x90] sm:$0xff] %v804
        %1038 = vst [vmem:[#allocation3 + $0x98] sm:$0xff] %v805
        %v1039 = vld [vmem:[#allocation2 + $0x8] sm:$0xff]
        %v1040 = vld [vmem:[#allocation2 + $0x10] sm:$0xff]
        %v1041 = vld [vmem:[#allocation2 + $0x18] sm:$0xff]
        %v1042 = vld [vmem:[#allocation2 + $0x28] sm:$0xff]
        %v1043 = vld [vmem:[#allocation2 + $0x30] sm:$0xff]
        %v1044 = vld [vmem:[#allocation2 + $0x38] sm:$0xff]
        %s1045 = scalar_lea.vmem [#allocation12], 5
        %v1046 = vld [vmem:[%s1045] ss:$8 sm:$0x3]
        %v1048 = vperm.slane %v1046, 0
        %v1049 = vperm.slane %v1046, 1
        %1050 = vrot.lane.b32.xlu0 %v1048, 1
        %v1051 = vpop.permute.xlu0 %1050
        %1052 = vrot.lane.b32.xlu0 %v1049, 1
        %v1053 = vpop.permute.xlu0 %1052
        %v1054 = vsel %vm1022, %v1051, %v1053
        %v1058 = vmul.f32 %v1039, %v1051
        %v1059 = vmul.f32 %v1040, %v1054
        %v1060 = vmul.f32 %v1041, %v1053
        %v1061 = vmul.f32 %v1042, %v1051
        %v1062 = vmul.f32 %v1043, %v1054
        %v1063 = vmul.f32 %v1044, %v1053
        %1070 = vrot.lane.b32.xlu0 %v1058, 127
        %v1071 = vpop.permute.xlu0 %1070
        %1072 = vrot.lane.b32.xlu0 %v1059, 127
        %v1073 = vpop.permute.xlu0 %1072
        %1074 = vrot.lane.b32.xlu0 %v1060, 127
        %v1075 = vpop.permute.xlu0 %1074
        %1076 = vrot.lane.b32.xlu0 %v1061, 127
        %v1077 = vpop.permute.xlu0 %1076
        %1078 = vrot.lane.b32.xlu0 %v1062, 127
        %v1079 = vpop.permute.xlu0 %1078
        %1080 = vrot.lane.b32.xlu0 %v1063, 127
        %v1081 = vpop.permute.xlu0 %1080
        %v1082 = vsel %vm993, %v1071, %v1073
        %v1083 = vsel %vm993, %v1073, %v1075
        %v1084 = vsel %vm993, %v1077, %v1079
        %v1085 = vsel %vm993, %v1079, %v1081
        %1090 = vst [vmem:[#allocation3 + $0xa0] sm:$0xff] %v1082
        %1091 = vst [vmem:[#allocation3 + $0xa8] sm:$0xff] %v1083
        %1092 = vst [vmem:[#allocation3 + $0xb0] sm:$0xff] %v1084
        %1093 = vst [vmem:[#allocation3 + $0xb8] sm:$0xff] %v1085
        %v1094 = vld [vmem:[#allocation2 + $0x8] sm:$0xff]
        %v1095 = vld [vmem:[#allocation2 + $0x10] sm:$0xff]
        %v1096 = vld [vmem:[#allocation2 + $0x18] sm:$0xff]
        %v1097 = vld [vmem:[#allocation2 + $0x28] sm:$0xff]
        %v1098 = vld [vmem:[#allocation2 + $0x30] sm:$0xff]
        %v1099 = vld [vmem:[#allocation2 + $0x38] sm:$0xff]
        %s1100 = scalar_lea.vmem [#allocation12], 6
        %v1101 = vld [vmem:[%s1100] ss:$8 sm:$0x3]
        %v1103 = vperm.slane %v1101, 0
        %v1104 = vperm.slane %v1101, 1
        %1105 = vrot.lane.b32.xlu0 %v1103, 15
        %v1106 = vpop.permute.xlu0 %1105
        %1107 = vrot.lane.b32.xlu0 %v1104, 15
        %v1108 = vpop.permute.xlu0 %1107
        %v1109 = vsel %vm965, %v1106, %v1108
        %v1113 = vmul.f32 %v1094, %v1106
        %v1114 = vmul.f32 %v1095, %v1109
        %v1115 = vmul.f32 %v1096, %v1108
        %v1116 = vmul.f32 %v1097, %v1106
        %v1117 = vmul.f32 %v1098, %v1109
        %v1118 = vmul.f32 %v1099, %v1108
        %1125 = vrot.lane.b32.xlu0 %v1113, 113
        %v1126 = vpop.permute.xlu0 %1125
        %1127 = vrot.lane.b32.xlu0 %v1114, 113
        %v1128 = vpop.permute.xlu0 %1127
        %1129 = vrot.lane.b32.xlu0 %v1115, 113
        %v1130 = vpop.permute.xlu0 %1129
        %1131 = vrot.lane.b32.xlu0 %v1116, 113
        %v1132 = vpop.permute.xlu0 %1131
        %1133 = vrot.lane.b32.xlu0 %v1117, 113
        %v1134 = vpop.permute.xlu0 %1133
        %1135 = vrot.lane.b32.xlu0 %v1118, 113
        %v1136 = vpop.permute.xlu0 %1135
        %v1137 = vsel %vm936, %v1126, %v1128
        %v1138 = vsel %vm936, %v1128, %v1130
        %v1139 = vsel %vm936, %v1132, %v1134
        %v1140 = vsel %vm936, %v1134, %v1136
        %1145 = vst [vmem:[#allocation3 + $0xc0] sm:$0xff] %v1137
        %1146 = vst [vmem:[#allocation3 + $0xc8] sm:$0xff] %v1138
        %1147 = vst [vmem:[#allocation3 + $0xd0] sm:$0xff] %v1139
        %1148 = vst [vmem:[#allocation3 + $0xd8] sm:$0xff] %v1140
        %v1149 = vld [vmem:[#allocation2 + $0x8] sm:$0xff]
        %v1150 = vld [vmem:[#allocation2 + $0x10] sm:$0xff]
        %v1151 = vld [vmem:[#allocation2 + $0x18] sm:$0xff]
        %v1152 = vld [vmem:[#allocation2 + $0x28] sm:$0xff]
        %v1153 = vld [vmem:[#allocation2 + $0x30] sm:$0xff]
        %v1154 = vld [vmem:[#allocation2 + $0x38] sm:$0xff]
        %s1155 = scalar_lea.vmem [#allocation12], 7
        %v1156 = vld [vmem:[%s1155] ss:$8 sm:$0x3]
        %v1158 = vperm.slane %v1156, 0
        %v1159 = vperm.slane %v1156, 1
        %1160 = vrot.lane.b32.xlu0 %v1158, 16
        %v1161 = vpop.permute.xlu0 %1160
        %1162 = vrot.lane.b32.xlu0 %v1159, 16
        %v1163 = vpop.permute.xlu0 %1162
        %v1164 = vsel %vm625, %v1161, %v1163
        %v1168 = vmul.f32 %v1149, %v1161
        %v1169 = vmul.f32 %v1150, %v1164
        %v1170 = vmul.f32 %v1151, %v1163
        %v1171 = vmul.f32 %v1152, %v1161
        %v1172 = vmul.f32 %v1153, %v1164
        %v1173 = vmul.f32 %v1154, %v1163
        %1180 = vrot.lane.b32.xlu0 %v1168, 112
        %v1181 = vpop.permute.xlu0 %1180
        %1182 = vrot.lane.b32.xlu0 %v1169, 112
        %v1183 = vpop.permute.xlu0 %1182
        %1184 = vrot.lane.b32.xlu0 %v1170, 112
        %v1185 = vpop.permute.xlu0 %1184
        %1186 = vrot.lane.b32.xlu0 %v1171, 112
        %v1187 = vpop.permute.xlu0 %1186
        %1188 = vrot.lane.b32.xlu0 %v1172, 112
        %v1189 = vpop.permute.xlu0 %1188
        %1190 = vrot.lane.b32.xlu0 %v1173, 112
        %v1191 = vpop.permute.xlu0 %1190
        %v1192 = vsel %vm880, %v1181, %v1183
        %v1193 = vsel %vm880, %v1183, %v1185
        %v1194 = vsel %vm880, %v1187, %v1189
        %v1195 = vsel %vm880, %v1189, %v1191
        %1200 = vst [vmem:[#allocation3 + $0xe0] sm:$0xff] %v1192
        %1201 = vst [vmem:[#allocation3 + $0xe8] sm:$0xff] %v1193
        %1202 = vst [vmem:[#allocation3 + $0xf0] sm:$0xff] %v1194
        %1203 = vst [vmem:[#allocation3 + $0xf8] sm:$0xff] %v1195
        %v1204 = vld [vmem:[#allocation2 + $0x8] sm:$0xff]
        %v1205 = vld [vmem:[#allocation2 + $0x10] sm:$0xff]
        %v1206 = vld [vmem:[#allocation2 + $0x18] sm:$0xff]
        %v1207 = vld [vmem:[#allocation2 + $0x28] sm:$0xff]
        %v1208 = vld [vmem:[#allocation2 + $0x30] sm:$0xff]
        %v1209 = vld [vmem:[#allocation2 + $0x38] sm:$0xff]
        %s1210 = scalar_lea.vmem [#allocation12], 16
        %v1211 = vld [vmem:[%s1210] ss:$8 sm:$0x3]
        %v1213 = vperm.slane %v1211, 0
        %v1214 = vperm.slane %v1211, 1
        %1215 = vrot.lane.b32.xlu0 %v1213, 17
        %v1216 = vpop.permute.xlu0 %1215
        %1217 = vrot.lane.b32.xlu0 %v1214, 17
        %v1218 = vpop.permute.xlu0 %1217
        %v1219 = vsel %vm537, %v1216, %v1218
        %v1223 = vmul.f32 %v1204, %v1216
        %v1224 = vmul.f32 %v1205, %v1219
        %v1225 = vmul.f32 %v1206, %v1218
        %v1226 = vmul.f32 %v1207, %v1216
        %v1227 = vmul.f32 %v1208, %v1219
        %v1228 = vmul.f32 %v1209, %v1218
        %1235 = vrot.lane.b32.xlu0 %v1223, 111
        %v1236 = vpop.permute.xlu0 %1235
        %1237 = vrot.lane.b32.xlu0 %v1224, 111
        %v1238 = vpop.permute.xlu0 %1237
        %1239 = vrot.lane.b32.xlu0 %v1225, 111
        %v1240 = vpop.permute.xlu0 %1239
        %1241 = vrot.lane.b32.xlu0 %v1226, 111
        %v1242 = vpop.permute.xlu0 %1241
        %1243 = vrot.lane.b32.xlu0 %v1227, 111
        %v1244 = vpop.permute.xlu0 %1243
        %1245 = vrot.lane.b32.xlu0 %v1228, 111
        %v1246 = vpop.permute.xlu0 %1245
        %v1247 = vsel %vm824, %v1236, %v1238
        %v1248 = vsel %vm824, %v1238, %v1240
        %v1249 = vsel %vm824, %v1242, %v1244
        %v1250 = vsel %vm824, %v1244, %v1246
        %1255 = vst [vmem:[#allocation3 + $0x100] sm:$0xff] %v1247
        %1256 = vst [vmem:[#allocation3 + $0x108] sm:$0xff] %v1248
        %1257 = vst [vmem:[#allocation3 + $0x110] sm:$0xff] %v1249
        %1258 = vst [vmem:[#allocation3 + $0x118] sm:$0xff] %v1250
        %v1259 = vld [vmem:[%s4] sm:$0xff]
        %v1260 = vld [vmem:[%s4 + $0x8] sm:$0xff]
        %v1261 = vld [vmem:[%s4 + $0x10] sm:$0xff]
        %v1262 = vld [vmem:[%s4 + $0x18] sm:$0xff]
        %v1263 = vld [vmem:[#allocation3] sm:$0xff]
        %v1264 = vld [vmem:[#allocation3 + $0x8] sm:$0xff]
        %v1265 = vld [vmem:[#allocation3 + $0x10] sm:$0xff]
        %v1266 = vld [vmem:[#allocation3 + $0x18] sm:$0xff]
        %v1267 = vld [vmem:[#allocation3 + $0x20] sm:$0xff]
        %v1268 = vld [vmem:[#allocation3 + $0x28] sm:$0xff]
        %v1269 = vld [vmem:[#allocation3 + $0x30] sm:$0xff]
        %v1270 = vld [vmem:[#allocation3 + $0x38] sm:$0xff]
        %v1271 = vld [vmem:[#allocation3 + $0x40] sm:$0xff]
        %v1272 = vld [vmem:[#allocation3 + $0x48] sm:$0xff]
        %v1273 = vld [vmem:[#allocation3 + $0x50] sm:$0xff]
        %v1274 = vld [vmem:[#allocation3 + $0x58] sm:$0xff]
        %v1275 = vld [vmem:[#allocation3 + $0x60] sm:$0xff]
        %v1276 = vld [vmem:[#allocation3 + $0x68] sm:$0xff]
        %v1277 = vld [vmem:[#allocation3 + $0x70] sm:$0xff]
        %v1278 = vld [vmem:[#allocation3 + $0x78] sm:$0xff]
        %v1279 = vld [vmem:[#allocation3 + $0x80] sm:$0xff]
        %v1280 = vld [vmem:[#allocation3 + $0x88] sm:$0xff]
        %v1281 = vld [vmem:[#allocation3 + $0x90] sm:$0xff]
        %v1282 = vld [vmem:[#allocation3 + $0x98] sm:$0xff]
        %v1283 = vld [vmem:[#allocation3 + $0xa0] sm:$0xff]
        %v1284 = vld [vmem:[#allocation3 + $0xa8] sm:$0xff]
        %v1285 = vld [vmem:[#allocation3 + $0xb0] sm:$0xff]
        %v1286 = vld [vmem:[#allocation3 + $0xb8] sm:$0xff]
        %v1287 = vld [vmem:[#allocation3 + $0xc0] sm:$0xff]
        %v1288 = vld [vmem:[#allocation3 + $0xc8] sm:$0xff]
        %v1289 = vld [vmem:[#allocation3 + $0xd0] sm:$0xff]
        %v1290 = vld [vmem:[#allocation3 + $0xd8] sm:$0xff]
        %v1291 = vld [vmem:[#allocation3 + $0xe0] sm:$0xff]
        %v1292 = vld [vmem:[#allocation3 + $0xe8] sm:$0xff]
        %v1293 = vld [vmem:[#allocation3 + $0xf0] sm:$0xff]
        %v1294 = vld [vmem:[#allocation3 + $0xf8] sm:$0xff]
        %v1295 = vld [vmem:[#allocation3 + $0x100] sm:$0xff]
        %v1296 = vld [vmem:[#allocation3 + $0x108] sm:$0xff]
        %v1297 = vld [vmem:[#allocation3 + $0x110] sm:$0xff]
        %v1298 = vld [vmem:[#allocation3 + $0x118] sm:$0xff]
        %v1299 = vld [vmem:[%s5] sm:$0xff]
        %v1300 = vld [vmem:[%s5 + $0x8] sm:$0xff]
        %1302 = vset.pattern.permute.xlu0 3
        %1303 = vperm.xlu0 %1302, %v1299
        %v1304 = vpop.permute.xlu0 %1303
        %1307 = vset.pattern.permute.xlu0 3
        %1308 = vperm.xlu0 %1307, %v1300
        %v1309 = vpop.permute.xlu0 %1308
        %v1312 = vsel %vm625, %v1260, 0
        %v1315 = vsel %vm625, %v1262, 0
        %1317 = vmatpush.msra.mxu0 %v1293
        %1318 = vmatpush.msra.mxu0 %v1291
        %1319 = vmatpush.msra.mxu0 %v1289
        %1320 = vmatpush.msra.mxu0 %v1287
        %1321 = vmatpush.msra.mxu0 %v1285
        %1322 = vmatpush.msra.mxu0 %v1283
        %1323 = vmatpush.msra.mxu0 %v1281
        %1324 = vmatpush.msra.mxu0 %v1279
        %1325 = vmatpush.msra.mxu0 %v1277
        %1326 = vmatpush.msra.mxu0 %v1275
        %1327 = vmatpush.msra.mxu0 %v1273
        %1328 = vmatpush.msra.mxu0 %v1271
        %1329 = vmatpush.msra.mxu0 %v1269
        %1330 = vmatpush.msra.mxu0 %v1267
        %1331 = vmatpush.msra.mxu0 %v1265
        %1332 = vmatpush.msra.mxu0 %v1263
        %1333 = vmatmul.f32.gmra.mxu0 %v1259
        %v1334 = vpop.f32.mrf.mxu0
        %v1335 = vadd.f32 %v1304, %v1334
        %1336 = vmatmul.f32.gmra.mxu0 %v1261
        %v1337 = vpop.f32.mrf.mxu0
        %v1338 = vadd.f32 %v1309, %v1337
        %1339 = vdwg.mxu0
        %1340 = vmatpush.msra.mxu0 0.0
        %1341 = vmatpush.msra.mxu0 0.0
        %1342 = vmatpush.msra.mxu0 0.0
        %1343 = vmatpush.msra.mxu0 0.0
        %1344 = vmatpush.msra.mxu0 0.0
        %1345 = vmatpush.msra.mxu0 0.0
        %1346 = vmatpush.msra.mxu0 0.0
        %1347 = vmatpush.msra.mxu0 0.0
        %1348 = vmatpush.msra.mxu0 0.0
        %1349 = vmatpush.msra.mxu0 0.0
        %1350 = vmatpush.msra.mxu0 0.0
        %1351 = vmatpush.msra.mxu0 0.0
        %1352 = vmatpush.msra.mxu0 0.0
        %1353 = vmatpush.msra.mxu0 0.0
        %1354 = vmatpush.msra.mxu0 %v1297
        %1355 = vmatpush.msra.mxu0 %v1295
        %1356 = vmatmul.f32.gmra.mxu0 %v1312
        %v1357 = vpop.f32.mrf.mxu0
        %v1358 = vadd.f32 %v1335, %v1357
        %1359 = vmatmul.f32.gmra.mxu0 %v1315
        %v1360 = vpop.f32.mrf.mxu0
        %v1361 = vadd.f32 %v1338, %v1360
        %1362 = vdwg.mxu0
        %1363 = vmatpush.msra.mxu0 %v1294
        %1364 = vmatpush.msra.mxu0 %v1292
        %1365 = vmatpush.msra.mxu0 %v1290
        %1366 = vmatpush.msra.mxu0 %v1288
        %1367 = vmatpush.msra.mxu0 %v1286
        %1368 = vmatpush.msra.mxu0 %v1284
        %1369 = vmatpush.msra.mxu0 %v1282
        %1370 = vmatpush.msra.mxu0 %v1280
        %1371 = vmatpush.msra.mxu0 %v1278
        %1372 = vmatpush.msra.mxu0 %v1276
        %1373 = vmatpush.msra.mxu0 %v1274
        %1374 = vmatpush.msra.mxu0 %v1272
        %1375 = vmatpush.msra.mxu0 %v1270
        %1376 = vmatpush.msra.mxu0 %v1268
        %1377 = vmatpush.msra.mxu0 %v1266
        %1378 = vmatpush.msra.mxu0 %v1264
        %1379 = vmatmul.f32.gmra.mxu0 %v1259
        %v1380 = vpop.f32.mrf.mxu0
        %v1381 = vadd.f32 %v1304, %v1380
        %1382 = vmatmul.f32.gmra.mxu0 %v1261
        %v1383 = vpop.f32.mrf.mxu0
        %v1384 = vadd.f32 %v1309, %v1383
        %1385 = vdwg.mxu0
        %1386 = vmatpush.msra.mxu0 0.0
        %1387 = vmatpush.msra.mxu0 0.0
        %1388 = vmatpush.msra.mxu0 0.0
        %1389 = vmatpush.msra.mxu0 0.0
        %1390 = vmatpush.msra.mxu0 0.0
        %1391 = vmatpush.msra.mxu0 0.0
        %1392 = vmatpush.msra.mxu0 0.0
        %1393 = vmatpush.msra.mxu0 0.0
        %1394 = vmatpush.msra.mxu0 0.0
        %1395 = vmatpush.msra.mxu0 0.0
        %1396 = vmatpush.msra.mxu0 0.0
        %1397 = vmatpush.msra.mxu0 0.0
        %1398 = vmatpush.msra.mxu0 0.0
        %1399 = vmatpush.msra.mxu0 0.0
        %1400 = vmatpush.msra.mxu0 %v1298
        %1401 = vmatpush.msra.mxu0 %v1296
        %1402 = vmatmul.f32.gmra.mxu0 %v1312
        %v1403 = vpop.f32.mrf.mxu0
        %v1404 = vadd.f32 %v1381, %v1403
        %1405 = vmatmul.f32.gmra.mxu0 %v1315
        %v1406 = vpop.f32.mrf.mxu0
        %v1407 = vadd.f32 %v1384, %v1406
        %1408 = vdwg.mxu0
        %1409 = vst [vmem:[%s514] sm:$0xff] %v1358
        %1410 = vst [vmem:[%s514 + $0x8] sm:$0xff] %v1404
        %1411 = vst [vmem:[%s514 + $0x10] sm:$0xff] %v1361
        %1412 = vst [vmem:[%s514 + $0x18] sm:$0xff] %v1407
        %1413 = vst.msk [vmem:[#allocation2 + $0x8] sm:$0xff] %vm749, %v731
        %1414 = vst.msk [vmem:[#allocation2 + $0x28] sm:$0xff] %vm749, %v732
        %v1415 = vld [vmem:[#allocation2] sm:$0xff]
        %v1416 = vld [vmem:[#allocation2 + $0x8] sm:$0xff]
        %v1417 = vld [vmem:[#allocation2 + $0x20] sm:$0xff]
        %v1418 = vld [vmem:[#allocation2 + $0x28] sm:$0xff]
        %v1419 = vld [vmem:[#allocation12 + $0x11] ss:$0 sm:$0xff]
        %1421 = vrot.lane.b32.xlu0 %v1419, 119
        %v1422 = vpop.permute.xlu0 %1421
        %v1424 = vmul.f32 %v1415, %v1422
        %v1425 = vmul.f32 %v1416, %v1422
        %v1426 = vmul.f32 %v1417, %v1422
        %v1427 = vmul.f32 %v1418, %v1422
        %1432 = vrot.lane.b32.xlu0 %v1424, 9
        %v1433 = vpop.permute.xlu0 %1432
        %1434 = vrot.lane.b32.xlu0 %v1425, 9
        %v1435 = vpop.permute.xlu0 %1434
        %1436 = vrot.lane.b32.xlu0 %v1426, 9
        %v1437 = vpop.permute.xlu0 %1436
        %1438 = vrot.lane.b32.xlu0 %v1427, 9
        %v1439 = vpop.permute.xlu0 %1438
        %vm1440 = vcmask 72704
        %v1441 = vsel %vm1440, %v1433, %v1435
        %v1442 = vsel %vm1440, %v1437, %v1439
        %1445 = vst.msk [vmem:[#allocation3] sm:$0xff] %vm749, %v1441
        %1446 = vst.msk [vmem:[#allocation3 + $0x10] sm:$0xff] %vm749, %v1442
        %v1447 = vld [vmem:[#allocation2] sm:$0xff]
        %v1448 = vld [vmem:[#allocation2 + $0x8] sm:$0xff]
        %v1449 = vld [vmem:[#allocation2 + $0x20] sm:$0xff]
        %v1450 = vld [vmem:[#allocation2 + $0x28] sm:$0xff]
        %v1451 = vld [vmem:[#allocation12 + $0x12] ss:$0 sm:$0xff]
        %1453 = vrot.lane.b32.xlu0 %v1451, 120
        %v1454 = vpop.permute.xlu0 %1453
        %v1456 = vmul.f32 %v1447, %v1454
        %v1457 = vmul.f32 %v1448, %v1454
        %v1458 = vmul.f32 %v1449, %v1454
        %v1459 = vmul.f32 %v1450, %v1454
        %1464 = vrot.lane.b32.xlu0 %v1456, 8
        %v1465 = vpop.permute.xlu0 %1464
        %1466 = vrot.lane.b32.xlu0 %v1457, 8
        %v1467 = vpop.permute.xlu0 %1466
        %1468 = vrot.lane.b32.xlu0 %v1458, 8
        %v1469 = vpop.permute.xlu0 %1468
        %1470 = vrot.lane.b32.xlu0 %v1459, 8
        %v1471 = vpop.permute.xlu0 %1470
        %v1472 = vsel %vm559, %v1465, %v1467
        %v1473 = vsel %vm559, %v1469, %v1471
        %1476 = vst.msk [vmem:[#allocation3 + $0x20] sm:$0xff] %vm749, %v1472
        %1477 = vst.msk [vmem:[#allocation3 + $0x30] sm:$0xff] %vm749, %v1473
        %v1478 = vld [vmem:[#allocation2] sm:$0xff]
        %v1479 = vld [vmem:[#allocation2 + $0x8] sm:$0xff]
        %v1480 = vld [vmem:[#allocation2 + $0x20] sm:$0xff]
        %v1481 = vld [vmem:[#allocation2 + $0x28] sm:$0xff]
        %v1482 = vld [vmem:[#allocation12 + $0x13] ss:$0 sm:$0xff]
        %1484 = vrot.lane.b32.xlu0 %v1482, 121
        %v1485 = vpop.permute.xlu0 %1484
        %v1487 = vmul.f32 %v1478, %v1485
        %v1488 = vmul.f32 %v1479, %v1485
        %v1489 = vmul.f32 %v1480, %v1485
        %v1490 = vmul.f32 %v1481, %v1485
        %1495 = vrot.lane.b32.xlu0 %v1487, 7
        %v1496 = vpop.permute.xlu0 %1495
        %1497 = vrot.lane.b32.xlu0 %v1488, 7
        %v1498 = vpop.permute.xlu0 %1497
        %1499 = vrot.lane.b32.xlu0 %v1489, 7
        %v1500 = vpop.permute.xlu0 %1499
        %1501 = vrot.lane.b32.xlu0 %v1490, 7
        %v1502 = vpop.permute.xlu0 %1501
        %vm1503 = vcmask 56320
        %v1504 = vsel %vm1503, %v1496, %v1498
        %v1505 = vsel %vm1503, %v1500, %v1502
        %1508 = vst.msk [vmem:[#allocation3 + $0x40] sm:$0xff] %vm749, %v1504
        %1509 = vst.msk [vmem:[#allocation3 + $0x50] sm:$0xff] %vm749, %v1505
        %v1510 = vld [vmem:[#allocation2] sm:$0xff]
        %v1511 = vld [vmem:[#allocation2 + $0x8] sm:$0xff]
        %v1512 = vld [vmem:[#allocation2 + $0x20] sm:$0xff]
        %v1513 = vld [vmem:[#allocation2 + $0x28] sm:$0xff]
        %v1514 = vld [vmem:[#allocation12 + $0x14] ss:$0 sm:$0xff]
        %1516 = vrot.lane.b32.xlu0 %v1514, 127
        %v1517 = vpop.permute.xlu0 %1516
        %v1519 = vmul.f32 %v1510, %v1517
        %v1520 = vmul.f32 %v1511, %v1517
        %v1521 = vmul.f32 %v1512, %v1517
        %v1522 = vmul.f32 %v1513, %v1517
        %1527 = vrot.lane.b32.xlu0 %v1519, 1
        %v1528 = vpop.permute.xlu0 %1527
        %1529 = vrot.lane.b32.xlu0 %v1520, 1
        %v1530 = vpop.permute.xlu0 %1529
        %1531 = vrot.lane.b32.xlu0 %v1521, 1
        %v1532 = vpop.permute.xlu0 %1531
        %1533 = vrot.lane.b32.xlu0 %v1522, 1
        %v1534 = vpop.permute.xlu0 %1533
        %v1535 = vsel %vm1022, %v1528, %v1530
        %v1536 = vsel %vm1022, %v1532, %v1534
        %1539 = vst.msk [vmem:[#allocation3 + $0x60] sm:$0xff] %vm749, %v1535
        %1540 = vst.msk [vmem:[#allocation3 + $0x70] sm:$0xff] %vm749, %v1536
        %1541 = vst.msk [vmem:[#allocation3 + $0x80] sm:$0xff] %vm749, %v731
        %1542 = vst.msk [vmem:[#allocation3 + $0x90] sm:$0xff] %vm749, %v732
        %v1543 = vld [vmem:[#allocation2 + $0x8] sm:$0xff]
        %v1544 = vld [vmem:[#allocation2 + $0x28] sm:$0xff]
        %v1545 = vld [vmem:[#allocation12 + $0x16] ss:$0 sm:$0xff]
        %1547 = vrot.lane.b32.xlu0 %v1545, 1
        %v1548 = vpop.permute.xlu0 %1547
        %v1550 = vmul.f32 %v1543, %v1548
        %v1551 = vmul.f32 %v1544, %v1548
        %1554 = vrot.lane.b32.xlu0 %v1550, 127
        %v1555 = vpop.permute.xlu0 %1554
        %1556 = vrot.lane.b32.xlu0 %v1551, 127
        %v1557 = vpop.permute.xlu0 %1556
        %1560 = vst.msk [vmem:[#allocation3 + $0xa0] sm:$0xff] %vm749, %v1555
        %1561 = vst.msk [vmem:[#allocation3 + $0xb0] sm:$0xff] %vm749, %v1557
        %v1562 = vld [vmem:[#allocation2 + $0x8] sm:$0xff]
        %v1563 = vld [vmem:[#allocation2 + $0x28] sm:$0xff]
        %v1564 = vld [vmem:[#allocation12 + $0x17] ss:$0 sm:$0xff]
        %1566 = vrot.lane.b32.xlu0 %v1564, 7
        %v1567 = vpop.permute.xlu0 %1566
        %v1569 = vmul.f32 %v1562, %v1567
        %v1570 = vmul.f32 %v1563, %v1567
        %1573 = vrot.lane.b32.xlu0 %v1569, 121
        %v1574 = vpop.permute.xlu0 %1573
        %1575 = vrot.lane.b32.xlu0 %v1570, 121
        %v1576 = vpop.permute.xlu0 %1575
        %1579 = vst.msk [vmem:[#allocation3 + $0xc0] sm:$0xff] %vm749, %v1574
        %1580 = vst.msk [vmem:[#allocation3 + $0xd0] sm:$0xff] %vm749, %v1576
        %v1581 = vld [vmem:[#allocation2 + $0x8] sm:$0xff]
        %v1582 = vld [vmem:[#allocation2 + $0x28] sm:$0xff]
        %v1583 = vld [vmem:[#allocation12 + $0x20] ss:$0 sm:$0xff]
        %1585 = vrot.lane.b32.xlu0 %v1583, 8
        %v1586 = vpop.permute.xlu0 %1585
        %v1588 = vmul.f32 %v1581, %v1586
        %v1589 = vmul.f32 %v1582, %v1586
        %1592 = vrot.lane.b32.xlu0 %v1588, 120
        %v1593 = vpop.permute.xlu0 %1592
        %1594 = vrot.lane.b32.xlu0 %v1589, 120
        %v1595 = vpop.permute.xlu0 %1594
        %1598 = vst.msk [vmem:[#allocation3 + $0xe0] sm:$0xff] %vm749, %v1593
        %1599 = vst.msk [vmem:[#allocation3 + $0xf0] sm:$0xff] %vm749, %v1595
        %v1600 = vld [vmem:[#allocation2 + $0x8] sm:$0xff]
        %v1601 = vld [vmem:[#allocation2 + $0x28] sm:$0xff]
        %v1602 = vld [vmem:[#allocation12 + $0x21] ss:$0 sm:$0xff]
        %1604 = vrot.lane.b32.xlu0 %v1602, 9
        %v1605 = vpop.permute.xlu0 %1604
        %v1607 = vmul.f32 %v1600, %v1605
        %v1608 = vmul.f32 %v1601, %v1605
        %1611 = vrot.lane.b32.xlu0 %v1607, 119
        %v1612 = vpop.permute.xlu0 %1611
        %1613 = vrot.lane.b32.xlu0 %v1608, 119
        %v1614 = vpop.permute.xlu0 %1613
        %1617 = vst.msk [vmem:[#allocation3 + $0x100] sm:$0xff] %vm749, %v1612
        %1618 = vst.msk [vmem:[#allocation3 + $0x110] sm:$0xff] %vm749, %v1614
        %s1619 = scalar_lea.vmem %s4, 32
        %v1620 = vld [vmem:[%s1619] sm:$0xff]
        %v1621 = vld [vmem:[%s1619 + $0x8] sm:$0xff]
        %v1622 = vld [vmem:[%s1619 + $0x10] sm:$0xff]
        %v1623 = vld [vmem:[%s1619 + $0x18] sm:$0xff]
        %v1624 = vld [vmem:[#allocation3] sm:$0xff]
        %v1625 = vld [vmem:[#allocation3 + $0x10] sm:$0xff]
        %v1626 = vld [vmem:[#allocation3 + $0x20] sm:$0xff]
        %v1627 = vld [vmem:[#allocation3 + $0x30] sm:$0xff]
        %v1628 = vld [vmem:[#allocation3 + $0x40] sm:$0xff]
        %v1629 = vld [vmem:[#allocation3 + $0x50] sm:$0xff]
        %v1630 = vld [vmem:[#allocation3 + $0x60] sm:$0xff]
        %v1631 = vld [vmem:[#allocation3 + $0x70] sm:$0xff]
        %v1632 = vld [vmem:[#allocation3 + $0x80] sm:$0xff]
        %v1633 = vld [vmem:[#allocation3 + $0x90] sm:$0xff]
        %v1634 = vld [vmem:[#allocation3 + $0xa0] sm:$0xff]
        %v1635 = vld [vmem:[#allocation3 + $0xb0] sm:$0xff]
        %v1636 = vld [vmem:[#allocation3 + $0xc0] sm:$0xff]
        %v1637 = vld [vmem:[#allocation3 + $0xd0] sm:$0xff]
        %v1638 = vld [vmem:[#allocation3 + $0xe0] sm:$0xff]
        %v1639 = vld [vmem:[#allocation3 + $0xf0] sm:$0xff]
        %v1640 = vld [vmem:[#allocation3 + $0x100] sm:$0xff]
        %v1641 = vld [vmem:[#allocation3 + $0x110] sm:$0xff]
        %v1642 = vld [vmem:[%s5] sm:$0xff]
        %v1643 = vld [vmem:[%s5 + $0x8] sm:$0xff]
        %1645 = vset.pattern.permute.xlu0 4
        %1646 = vperm.xlu0 %1645, %v1642
        %v1647 = vpop.permute.xlu0 %1646
        %1650 = vset.pattern.permute.xlu0 4
        %1651 = vperm.xlu0 %1650, %v1643
        %v1652 = vpop.permute.xlu0 %1651
        %v1655 = vsel %vm625, %v1621, 0
        %v1658 = vsel %vm625, %v1623, 0
        %1660 = vmatpush.msra.mxu0 %v1639
        %1661 = vmatpush.msra.mxu0 %v1638
        %1662 = vmatpush.msra.mxu0 %v1637
        %1663 = vmatpush.msra.mxu0 %v1636
        %1664 = vmatpush.msra.mxu0 %v1635
        %1665 = vmatpush.msra.mxu0 %v1634
        %1666 = vmatpush.msra.mxu0 %v1633
        %1667 = vmatpush.msra.mxu0 %v1632
        %1668 = vmatpush.msra.mxu0 %v1631
        %1669 = vmatpush.msra.mxu0 %v1630
        %1670 = vmatpush.msra.mxu0 %v1629
        %1671 = vmatpush.msra.mxu0 %v1628
        %1672 = vmatpush.msra.mxu0 %v1627
        %1673 = vmatpush.msra.mxu0 %v1626
        %1674 = vmatpush.msra.mxu0 %v1625
        %1675 = vmatpush.msra.mxu0 %v1624
        %1676 = vmatmul.f32.gmra.mxu0 %v1620
        %v1677 = vpop.f32.mrf.mxu0
        %v1678 = vadd.f32 %v1647, %v1677
        %1679 = vmatmul.f32.gmra.mxu0 %v1622
        %v1680 = vpop.f32.mrf.mxu0
        %v1681 = vadd.f32 %v1652, %v1680
        %1682 = vdwg.mxu0
        %1683 = vmatpush.msra.mxu0 0.0
        %1684 = vmatpush.msra.mxu0 0.0
        %1685 = vmatpush.msra.mxu0 0.0
        %1686 = vmatpush.msra.mxu0 0.0
        %1687 = vmatpush.msra.mxu0 0.0
        %1688 = vmatpush.msra.mxu0 0.0
        %1689 = vmatpush.msra.mxu0 0.0
        %1690 = vmatpush.msra.mxu0 0.0
        %1691 = vmatpush.msra.mxu0 0.0
        %1692 = vmatpush.msra.mxu0 0.0
        %1693 = vmatpush.msra.mxu0 0.0
        %1694 = vmatpush.msra.mxu0 0.0
        %1695 = vmatpush.msra.mxu0 0.0
        %1696 = vmatpush.msra.mxu0 0.0
        %1697 = vmatpush.msra.mxu0 %v1641
        %1698 = vmatpush.msra.mxu0 %v1640
        %1699 = vmatmul.f32.gmra.mxu0 %v1655
        %v1700 = vpop.f32.mrf.mxu0
        %v1701 = vadd.f32 %v1678, %v1700
        %1702 = vmatmul.f32.gmra.mxu0 %v1658
        %v1703 = vpop.f32.mrf.mxu0
        %v1704 = vadd.f32 %v1681, %v1703
        %1705 = vdwg.mxu0
        %1706 = vst.msk [vmem:[%s521] sm:$0xff] %vm749, %v1701
        %1707 = vst.msk [vmem:[%s521 + $0x8] sm:$0xff] %vm749, %v1704
        %1708 = vst.msk [vmem:[#allocation2 + $0x8] sm:$0xff] %vm625, %v695
        %1709 = vst.msk [vmem:[#allocation2 + $0x28] sm:$0xff] %vm625, %v698
        %v1710 = vld [vmem:[#allocation2] sm:$0xff]
        %v1711 = vld [vmem:[#allocation2 + $0x8] sm:$0xff]
        %v1712 = vld [vmem:[#allocation2 + $0x20] sm:$0xff]
        %v1713 = vld [vmem:[#allocation2 + $0x28] sm:$0xff]
        %v1714 = vld [vmem:[#allocation12 + $0x22] ss:$0 sm:$0xff]
        %1716 = vrot.lane.b32.xlu0 %v1714, 123
        %v1717 = vpop.permute.xlu0 %1716
        %v1719 = vmul.f32 %v1710, %v1717
        %v1720 = vmul.f32 %v1711, %v1717
        %v1721 = vmul.f32 %v1712, %v1717
        %v1722 = vmul.f32 %v1713, %v1717
        %1727 = vrot.lane.b32.xlu0 %v1719, 5
        %v1728 = vpop.permute.xlu0 %1727
        %1729 = vrot.lane.b32.xlu0 %v1720, 5
        %v1730 = vpop.permute.xlu0 %1729
        %1731 = vrot.lane.b32.xlu0 %v1721, 5
        %v1732 = vpop.permute.xlu0 %1731
        %1733 = vrot.lane.b32.xlu0 %v1722, 5
        %v1734 = vpop.permute.xlu0 %1733
        %vm1735 = vcmask 39936
        %v1736 = vsel %vm1735, %v1728, %v1730
        %v1737 = vsel %vm1735, %v1732, %v1734
        %1740 = vst.msk [vmem:[#allocation3] sm:$0xff] %vm625, %v1736
        %1741 = vst.msk [vmem:[#allocation3 + $0x10] sm:$0xff] %vm625, %v1737
        %v1742 = vld [vmem:[#allocation2] sm:$0xff]
        %v1743 = vld [vmem:[#allocation2 + $0x8] sm:$0xff]
        %v1744 = vld [vmem:[#allocation2 + $0x20] sm:$0xff]
        %v1745 = vld [vmem:[#allocation2 + $0x28] sm:$0xff]
        %v1746 = vld [vmem:[#allocation12 + $0x23] ss:$0 sm:$0xff]
        %1748 = vrot.lane.b32.xlu0 %v1746, 124
        %v1749 = vpop.permute.xlu0 %1748
        %v1751 = vmul.f32 %v1742, %v1749
        %v1752 = vmul.f32 %v1743, %v1749
        %v1753 = vmul.f32 %v1744, %v1749
        %v1754 = vmul.f32 %v1745, %v1749
        %1759 = vrot.lane.b32.xlu0 %v1751, 4
        %v1760 = vpop.permute.xlu0 %1759
        %1761 = vrot.lane.b32.xlu0 %v1752, 4
        %v1762 = vpop.permute.xlu0 %1761
        %1763 = vrot.lane.b32.xlu0 %v1753, 4
        %v1764 = vpop.permute.xlu0 %1763
        %1765 = vrot.lane.b32.xlu0 %v1754, 4
        %v1766 = vpop.permute.xlu0 %1765
        %vm1767 = vcmask 31744
        %v1768 = vsel %vm1767, %v1760, %v1762
        %v1769 = vsel %vm1767, %v1764, %v1766
        %1772 = vst.msk [vmem:[#allocation3 + $0x20] sm:$0xff] %vm625, %v1768
        %1773 = vst.msk [vmem:[#allocation3 + $0x30] sm:$0xff] %vm625, %v1769
        %v1774 = vld [vmem:[#allocation2] sm:$0xff]
        %v1775 = vld [vmem:[#allocation2 + $0x8] sm:$0xff]
        %v1776 = vld [vmem:[#allocation2 + $0x20] sm:$0xff]
        %v1777 = vld [vmem:[#allocation2 + $0x28] sm:$0xff]
        %v1778 = vld [vmem:[#allocation12 + $0x24] ss:$0 sm:$0xff]
        %1780 = vrot.lane.b32.xlu0 %v1778, 125
        %v1781 = vpop.permute.xlu0 %1780
        %v1783 = vmul.f32 %v1774, %v1781
        %v1784 = vmul.f32 %v1775, %v1781
        %v1785 = vmul.f32 %v1776, %v1781
        %v1786 = vmul.f32 %v1777, %v1781
        %1791 = vrot.lane.b32.xlu0 %v1783, 3
        %v1792 = vpop.permute.xlu0 %1791
        %1793 = vrot.lane.b32.xlu0 %v1784, 3
        %v1794 = vpop.permute.xlu0 %1793
        %1795 = vrot.lane.b32.xlu0 %v1785, 3
        %v1796 = vpop.permute.xlu0 %1795
        %1797 = vrot.lane.b32.xlu0 %v1786, 3
        %v1798 = vpop.permute.xlu0 %1797
        %vm1799 = vcmask 23552
        %v1800 = vsel %vm1799, %v1792, %v1794
        %v1801 = vsel %vm1799, %v1796, %v1798
        %1804 = vst.msk [vmem:[#allocation3 + $0x40] sm:$0xff] %vm625, %v1800
        %1805 = vst.msk [vmem:[#allocation3 + $0x50] sm:$0xff] %vm625, %v1801
        %v1806 = vld [vmem:[#allocation2] sm:$0xff]
        %v1807 = vld [vmem:[#allocation2 + $0x8] sm:$0xff]
        %v1808 = vld [vmem:[#allocation2 + $0x20] sm:$0xff]
        %v1809 = vld [vmem:[#allocation2 + $0x28] sm:$0xff]
        %v1810 = vld [vmem:[#allocation12 + $0x25] ss:$0 sm:$0xff]
        %1812 = vrot.lane.b32.xlu0 %v1810, 127
        %v1813 = vpop.permute.xlu0 %1812
        %v1815 = vmul.f32 %v1806, %v1813
        %v1816 = vmul.f32 %v1807, %v1813
        %v1817 = vmul.f32 %v1808, %v1813
        %v1818 = vmul.f32 %v1809, %v1813
        %1823 = vrot.lane.b32.xlu0 %v1815, 1
        %v1824 = vpop.permute.xlu0 %1823
        %1825 = vrot.lane.b32.xlu0 %v1816, 1
        %v1826 = vpop.permute.xlu0 %1825
        %1827 = vrot.lane.b32.xlu0 %v1817, 1
        %v1828 = vpop.permute.xlu0 %1827
        %1829 = vrot.lane.b32.xlu0 %v1818, 1
        %v1830 = vpop.permute.xlu0 %1829
        %v1831 = vsel %vm1022, %v1824, %v1826
        %v1832 = vsel %vm1022, %v1828, %v1830
        %1835 = vst.msk [vmem:[#allocation3 + $0x60] sm:$0xff] %vm625, %v1831
        %1836 = vst.msk [vmem:[#allocation3 + $0x70] sm:$0xff] %vm625, %v1832
        %1837 = vst.msk [vmem:[#allocation3 + $0x80] sm:$0xff] %vm625, %v695
        %1838 = vst.msk [vmem:[#allocation3 + $0x90] sm:$0xff] %vm625, %v698
        %v1839 = vld [vmem:[#allocation2 + $0x8] sm:$0xff]
        %v1840 = vld [vmem:[#allocation2 + $0x28] sm:$0xff]
        %v1841 = vld [vmem:[#allocation12 + $0x27] ss:$0 sm:$0xff]
        %1843 = vrot.lane.b32.xlu0 %v1841, 1
        %v1844 = vpop.permute.xlu0 %1843
        %v1846 = vmul.f32 %v1839, %v1844
        %v1847 = vmul.f32 %v1840, %v1844
        %1850 = vrot.lane.b32.xlu0 %v1846, 127
        %v1851 = vpop.permute.xlu0 %1850
        %1852 = vrot.lane.b32.xlu0 %v1847, 127
        %v1853 = vpop.permute.xlu0 %1852
        %1856 = vst.msk [vmem:[#allocation3 + $0xa0] sm:$0xff] %vm625, %v1851
        %1857 = vst.msk [vmem:[#allocation3 + $0xb0] sm:$0xff] %vm625, %v1853
        %v1858 = vld [vmem:[#allocation2 + $0x8] sm:$0xff]
        %v1859 = vld [vmem:[#allocation2 + $0x28] sm:$0xff]
        %v1860 = vld [vmem:[#allocation12 + $0x30] ss:$0 sm:$0xff]
        %1862 = vrot.lane.b32.xlu0 %v1860, 3
        %v1863 = vpop.permute.xlu0 %1862
        %v1865 = vmul.f32 %v1858, %v1863
        %v1866 = vmul.f32 %v1859, %v1863
        %1869 = vrot.lane.b32.xlu0 %v1865, 125
        %v1870 = vpop.permute.xlu0 %1869
        %1871 = vrot.lane.b32.xlu0 %v1866, 125
        %v1872 = vpop.permute.xlu0 %1871
        %1875 = vst.msk [vmem:[#allocation3 + $0xc0] sm:$0xff] %vm625, %v1870
        %1876 = vst.msk [vmem:[#allocation3 + $0xd0] sm:$0xff] %vm625, %v1872
        %v1877 = vld [vmem:[#allocation2 + $0x8] sm:$0xff]
        %v1878 = vld [vmem:[#allocation2 + $0x28] sm:$0xff]
        %v1879 = vld [vmem:[#allocation12 + $0x31] ss:$0 sm:$0xff]
        %1881 = vrot.lane.b32.xlu0 %v1879, 4
        %v1882 = vpop.permute.xlu0 %1881
        %v1884 = vmul.f32 %v1877, %v1882
        %v1885 = vmul.f32 %v1878, %v1882
        %1888 = vrot.lane.b32.xlu0 %v1884, 124
        %v1889 = vpop.permute.xlu0 %1888
        %1890 = vrot.lane.b32.xlu0 %v1885, 124
        %v1891 = vpop.permute.xlu0 %1890
        %1894 = vst.msk [vmem:[#allocation3 + $0xe0] sm:$0xff] %vm625, %v1889
        %1895 = vst.msk [vmem:[#allocation3 + $0xf0] sm:$0xff] %vm625, %v1891
        %v1896 = vld [vmem:[#allocation2 + $0x8] sm:$0xff]
        %v1897 = vld [vmem:[#allocation2 + $0x28] sm:$0xff]
        %v1898 = vld [vmem:[#allocation12 + $0x32] ss:$0 sm:$0xff]
        %1900 = vrot.lane.b32.xlu0 %v1898, 5
        %v1901 = vpop.permute.xlu0 %1900
        %v1903 = vmul.f32 %v1896, %v1901
        %v1904 = vmul.f32 %v1897, %v1901
        %1907 = vrot.lane.b32.xlu0 %v1903, 123
        %v1908 = vpop.permute.xlu0 %1907
        %1909 = vrot.lane.b32.xlu0 %v1904, 123
        %v1910 = vpop.permute.xlu0 %1909
        %1913 = vst.msk [vmem:[#allocation3 + $0x100] sm:$0xff] %vm625, %v1908
        %1914 = vst.msk [vmem:[#allocation3 + $0x110] sm:$0xff] %vm625, %v1910
        %s1915 = scalar_lea.vmem %s4, 64
        %v1916 = vld [vmem:[%s1915] sm:$0xff]
        %v1917 = vld [vmem:[%s1915 + $0x8] sm:$0xff]
        %v1918 = vld [vmem:[%s1915 + $0x10] sm:$0xff]
        %v1919 = vld [vmem:[%s1915 + $0x18] sm:$0xff]
        %v1920 = vld [vmem:[#allocation3] sm:$0xff]
        %v1921 = vld [vmem:[#allocation3 + $0x10] sm:$0xff]
        %v1922 = vld [vmem:[#allocation3 + $0x20] sm:$0xff]
        %v1923 = vld [vmem:[#allocation3 + $0x30] sm:$0xff]
        %v1924 = vld [vmem:[#allocation3 + $0x40] sm:$0xff]
        %v1925 = vld [vmem:[#allocation3 + $0x50] sm:$0xff]
        %v1926 = vld [vmem:[#allocation3 + $0x60] sm:$0xff]
        %v1927 = vld [vmem:[#allocation3 + $0x70] sm:$0xff]
        %v1928 = vld [vmem:[#allocation3 + $0x80] sm:$0xff]
        %v1929 = vld [vmem:[#allocation3 + $0x90] sm:$0xff]
        %v1930 = vld [vmem:[#allocation3 + $0xa0] sm:$0xff]
        %v1931 = vld [vmem:[#allocation3 + $0xb0] sm:$0xff]
        %v1932 = vld [vmem:[#allocation3 + $0xc0] sm:$0xff]
        %v1933 = vld [vmem:[#allocation3 + $0xd0] sm:$0xff]
        %v1934 = vld [vmem:[#allocation3 + $0xe0] sm:$0xff]
        %v1935 = vld [vmem:[#allocation3 + $0xf0] sm:$0xff]
        %v1936 = vld [vmem:[#allocation3 + $0x100] sm:$0xff]
        %v1937 = vld [vmem:[#allocation3 + $0x110] sm:$0xff]
        %v1938 = vld [vmem:[%s5] sm:$0xff]
        %v1939 = vld [vmem:[%s5 + $0x8] sm:$0xff]
        %1941 = vset.pattern.permute.xlu0 5
        %1942 = vperm.xlu0 %1941, %v1938
        %v1943 = vpop.permute.xlu0 %1942
        %1946 = vset.pattern.permute.xlu0 5
        %1947 = vperm.xlu0 %1946, %v1939
        %v1948 = vpop.permute.xlu0 %1947
        %v1951 = vsel %vm625, %v1917, 0
        %v1954 = vsel %vm625, %v1919, 0
        %1956 = vmatpush.msra.mxu0 %v1935
        %1957 = vmatpush.msra.mxu0 %v1934
        %1958 = vmatpush.msra.mxu0 %v1933
        %1959 = vmatpush.msra.mxu0 %v1932
        %1960 = vmatpush.msra.mxu0 %v1931
        %1961 = vmatpush.msra.mxu0 %v1930
        %1962 = vmatpush.msra.mxu0 %v1929
        %1963 = vmatpush.msra.mxu0 %v1928
        %1964 = vmatpush.msra.mxu0 %v1927
        %1965 = vmatpush.msra.mxu0 %v1926
        %1966 = vmatpush.msra.mxu0 %v1925
        %1967 = vmatpush.msra.mxu0 %v1924
        %1968 = vmatpush.msra.mxu0 %v1923
        %1969 = vmatpush.msra.mxu0 %v1922
        %1970 = vmatpush.msra.mxu0 %v1921
        %1971 = vmatpush.msra.mxu0 %v1920
        %1972 = vmatmul.f32.gmra.mxu0 %v1916
        %v1973 = vpop.f32.mrf.mxu0
        %v1974 = vadd.f32 %v1943, %v1973
        %1975 = vmatmul.f32.gmra.mxu0 %v1918
        %v1976 = vpop.f32.mrf.mxu0
        %v1977 = vadd.f32 %v1948, %v1976
        %1978 = vdwg.mxu0
        %1979 = vmatpush.msra.mxu0 0.0
        %1980 = vmatpush.msra.mxu0 0.0
        %1981 = vmatpush.msra.mxu0 0.0
        %1982 = vmatpush.msra.mxu0 0.0
        %1983 = vmatpush.msra.mxu0 0.0
        %1984 = vmatpush.msra.mxu0 0.0
        %1985 = vmatpush.msra.mxu0 0.0
        %1986 = vmatpush.msra.mxu0 0.0
        %1987 = vmatpush.msra.mxu0 0.0
        %1988 = vmatpush.msra.mxu0 0.0
        %1989 = vmatpush.msra.mxu0 0.0
        %1990 = vmatpush.msra.mxu0 0.0
        %1991 = vmatpush.msra.mxu0 0.0
        %1992 = vmatpush.msra.mxu0 0.0
        %1993 = vmatpush.msra.mxu0 %v1937
        %1994 = vmatpush.msra.mxu0 %v1936
        %1995 = vmatmul.f32.gmra.mxu0 %v1951
        %v1996 = vpop.f32.mrf.mxu0
        %v1997 = vadd.f32 %v1974, %v1996
        %1998 = vmatmul.f32.gmra.mxu0 %v1954
        %v1999 = vpop.f32.mrf.mxu0
        %v2000 = vadd.f32 %v1977, %v1999
        %2001 = vdwg.mxu0
        %2002 = vst.msk [vmem:[%s528] sm:$0xff] %vm625, %v1997
        %2003 = vst.msk [vmem:[%s528 + $0x8] sm:$0xff] %vm625, %v2000
        %s2004 = sand.u32 %s248, 1
        %s2005 = scalar_lea.sflag [#allocation6], %s2004
        %s2006 = sand.u32 %s248, 1
        %s2007 = smul.addr %s2006, 32
        %s2008 = scalar_lea.vmem [#allocation13], %s2007
        %s2009 = sand.u32 %s36, 1
        %s2010 = scalar_lea.sflag [#allocation15], %s2009
        %s2011 = sand.u32 %s274, 1
        %s2012 = smul.addr %s2011, 16
        %s2013 = scalar_lea.vmem [#allocation14], %s2012
        %s2014 = sand.u32 %s36, 1
        %s2015 = scalar_lea.sflag [#allocation15], %s2014
        %s2016 = sand.u32 %s300, 1
        %s2017 = smul.addr %s2016, 16
        %s2018 = scalar_lea.vmem [#allocation16], %s2017
        // Predicated region
        $region77: #{tpu_custom_call.1} parent=55 // pred_check
          %p2019 = pneg %p258
        $region78: #{tpu_custom_call.1} parent=55 // pred_check_branch
          %2021 = sbr.rel (%p2019) target = $region80
        $region79: #{tpu_custom_call.1} parent=55 // pred_region
          %2023 = vsyncadd %s2005, 0
          %s2024 = smul.addr %s36, 4
          %s2025 = smul.addr %s2024, 8
          %s2026 = scalar_lea.hbm %s9, %s2025
          %s2027 = sshll.u32 %s2008, 4
          %s2028 = int_to_ptr.vmem [resolvable:$true] %s2027
          %s2029 = sshll.u32 %s2026, 4
          %s2030 = int_to_ptr.hbm [resolvable:$true] %s2029
          %2035 = dma.vmem_to_hbm [thread:$0]  %s2028, 512, %s2030, %s2005, 256, 256, 16
        $region80: #{tpu_custom_call.1} parent=55 // pred_fallthru
          _
        // Predicated region
        $region81: #{tpu_custom_call.1} parent=55 // pred_check
          %p2036 = pneg %p284
        $region82: #{tpu_custom_call.1} parent=55 // pred_check_branch
          %2038 = sbr.rel (%p2036) target = $region84
        $region83: #{tpu_custom_call.1} parent=55 // pred_region
          %2040 = vsyncadd %s2010, 0
          %s2041 = smul.addr %s36, 2
          %s2042 = smul.addr %s2041, 8
          %s2043 = scalar_lea.hbm %s10, %s2042
          %s2044 = sshll.u32 %s2013, 4
          %s2045 = int_to_ptr.vmem [resolvable:$true] %s2044
          %s2046 = sshll.u32 %s2043, 4
          %s2047 = int_to_ptr.hbm [resolvable:$true] %s2046
          %2052 = dma.vmem_to_hbm [thread:$0]  %s2045, 256, %s2047, %s2010, 128, 128, 8
        $region84: #{tpu_custom_call.1} parent=55 // pred_fallthru
          _
        // Predicated region
        $region85: #{tpu_custom_call.1} parent=55 // pred_check
          %p2053 = pneg %p310
        $region86: #{tpu_custom_call.1} parent=55 // pred_check_branch
          %2055 = sbr.rel (%p2053) target = $region88
        $region87: #{tpu_custom_call.1} parent=55 // pred_region
          %2057 = vsyncadd %s2015, 0
          %s2058 = smul.addr %s36, 2
          %s2059 = smul.addr %s2058, 8
          %s2060 = scalar_lea.hbm %s11, %s2059
          %s2061 = sshll.u32 %s2018, 4
          %s2062 = int_to_ptr.vmem [resolvable:$true] %s2061
          %s2063 = sshll.u32 %s2060, 4
          %s2064 = int_to_ptr.hbm [resolvable:$true] %s2063
          %2069 = dma.vmem_to_hbm [thread:$0]  %s2062, 256, %s2064, %s2015, 128, 128, 8
        $region88: #{tpu_custom_call.1} parent=55 // pred_fallthru
          _
      $region56: #{tpu_custom_call.1} parent=5 // pred_fallthru
        _
      %p2070 = scmp.le.s32.totalorder 2, %s31
      // Predicated region
      $region89: #{tpu_custom_call.1} parent=5 // pred_check
        %p2071 = pneg %p2070
      $region90: #{tpu_custom_call.1} parent=5 // pred_check_branch
        %2073 = sbr.rel (%p2071) target = $region92
      $region91: #{tpu_custom_call.1} parent=5 // pred_region
        %s2074 = ssub.s32 %s31, 2
        // Predicated region
        $region93: #{tpu_custom_call.1} parent=91 // pred_check
          %p2075 = pneg %p264
        $region94: #{tpu_custom_call.1} parent=91 // pred_check_branch
          %2077 = sbr.rel (%p2075) target = $region96
        $region95: #{tpu_custom_call.1} parent=91 // pred_region
          %s2078 = sand.u32 %s249, 1
          %s2079 = scalar_lea.sflag [#allocation6], %s2078
          %s2080 = sand.u32 %s249, 1
          %s2081 = smul.addr %s2080, 32
          %s2082 = scalar_lea.vmem [#allocation13], %s2081
          %2084 = dma.done %s2079, 512
        $region96: #{tpu_custom_call.1} parent=91 // pred_fallthru
          _
        // Predicated region
        $region97: #{tpu_custom_call.1} parent=91 // pred_check
          %p2085 = pneg %p290
        $region98: #{tpu_custom_call.1} parent=91 // pred_check_branch
          %2087 = sbr.rel (%p2085) target = $region100
        $region99: #{tpu_custom_call.1} parent=91 // pred_region
          %s2088 = sand.u32 %s37, 1
          %s2089 = scalar_lea.sflag [#allocation15], %s2088
          %s2090 = sand.u32 %s275, 1
          %s2091 = smul.addr %s2090, 16
          %s2092 = scalar_lea.vmem [#allocation14], %s2091
          %2094 = dma.done %s2089, 256
        $region100: #{tpu_custom_call.1} parent=91 // pred_fallthru
          _
        // Predicated region
        $region101: #{tpu_custom_call.1} parent=91 // pred_check
          %p2095 = pneg %p316
        $region102: #{tpu_custom_call.1} parent=91 // pred_check_branch
          %2097 = sbr.rel (%p2095) target = $region104
        $region103: #{tpu_custom_call.1} parent=91 // pred_region
          %s2098 = sand.u32 %s37, 1
          %s2099 = scalar_lea.sflag [#allocation15], %s2098
          %s2100 = sand.u32 %s301, 1
          %s2101 = smul.addr %s2100, 16
          %s2102 = scalar_lea.vmem [#allocation16], %s2101
          %2104 = dma.done %s2099, 256
        $region104: #{tpu_custom_call.1} parent=91 // pred_fallthru
          _
      $region92: #{tpu_custom_call.1} parent=5 // pred_fallthru
        _
    $region6: #{tpu_custom_call.1} parent=1 // loop_footer
      %s35 = sadd.s32 1, %s31
    $region7: #{tpu_custom_call.1} parent=1 // loop_footer_branch
      %30 = sbr.rel target = $region3
    $region8: #{tpu_custom_call.1} parent=1 // loop_exit
      _
    %2105 = vsyncpa [#allocation5], 1
    %s2106 = scalar_lea.sflag [#allocation5], 1
    %2107 = vsyncpa %s2106, 1
    %2108 = vsyncpa [#allocation8], 1
    %s2109 = scalar_lea.sflag [#allocation8], 1
    %2110 = vsyncpa %s2109, 1
    %2111 = vsyncpa [#allocation11], 1
    %2112 = vsyncpa [#allocation6], 1
    %s2113 = scalar_lea.sflag [#allocation6], 1
    %2114 = vsyncpa %s2113, 1
    %2115 = vsyncpa [#allocation15], 1
    %s2116 = scalar_lea.sflag [#allocation15], 1
    %2117 = vsyncpa %s2116, 1

</llo_original>
